<compile_context>
chip_gen: v6e
topology: v6e:2x2x1
jax: 0.10.0
libtpu: 0.0.40
codegen_flags: <defaults>
</compile_context>

<pallas_src>
import functools
import math

import jax
import jax.numpy as jnp
from jax import lax
from jax.experimental import pallas as pl
from jax.experimental.pallas import tpu as pltpu


_EPS = 1e-5
_LANE = 128


def _round_up(a, b):
    return (a + b - 1) // b * b


def _vmem_params():
    """Generation-aware (scoped VMEM limit, per-step tile budget) in bytes."""
    cap = None
    try:
        cap = getattr(pltpu.get_tpu_info(), "vmem_capacity_bytes", None)
    except Exception:
        cap = None
    if not cap:
        cap = 64 << 20                      # conservative: v7x per-TC VMEM
    limit = min((cap * 3) // 4, 100 << 20)  # ~48 MiB on v7x, ~96 MiB on v5e/v6e
    budget = (limit * 2) // 3               # ~32 MiB / ~64 MiB for the tiles
    return int(limit), int(budget)


def _lane_group(c_out):
    """Smallest g such that (g * c_out) % 128 == 0 (lane-dense output view)."""
    return _LANE // math.gcd(c_out, _LANE)


def _pick_tile(n_rows, tokens_per_row, est_bytes, vmem_budget, token_multiple=1):
    """Pick rows-per-tile for a 1-D grid.

    Constraints: the per-tile token count must be divisible by
    8 * token_multiple (sublane alignment of the grouped output block), or the
    tile must cover the whole array; the VMEM estimate must fit the budget.
    Preference: even grid with >= 4 steps (v7x megacore balance + pipelining),
    then >= 4 steps, then even, then >= 2, then anything -- and within each
    class the LARGEST tile (mem-bound op: amortize per-step overhead).
    """
    align = 8 * token_multiple
    divisors = [d for d in range(1, n_rows + 1) if n_rows % d == 0]
    legal = [d for d in divisors
             if (d * tokens_per_row) % align == 0 or d == n_rows]
    fits = [d for d in legal if est_bytes(d) <= vmem_budget]
    if not fits:
        return min(legal) if legal else n_rows
    prefs = (
        lambda d: (n_rows // d) % 2 == 0 and n_rows // d >= 4,
        lambda d: n_rows // d >= 4,
        lambda d: (n_rows // d) % 2 == 0 and n_rows // d >= 2,
        lambda d: n_rows // d >= 2,
        lambda d: True,
    )
    for pred in prefs:
        sel = [d for d in fits if pred(d)]
        if sel:
            return max(sel)
    return max(fits)


def _attempt(build, args, g):
    """Invoke progressively more conservative builds of the same kernel.

    Order: single-buffered weights + lane-dense store -> double-buffered
    weights -> non-grouped (g=1) store.  All variants are semantically
    identical; retries only trade performance for backend support.
    """
    last = None
    tried = set()
    for sbw, gg in ((True, g), (False, g), (True, 1), (False, 1)):
        if (sbw, gg) in tried:
            continue
        tried.add((sbw, gg))
        try:
            return build(sbw, gg)(*args)
        except Exception as e:  # backend-dependent feature rejection
            last = e
    raise last


def _merge_ln_matmul_kernel(x_ref, we_ref, wo_ref, b_ref, o_ref, *, g):
    """Fused 2x2 merge + LayerNorm(4C) + Linear(4C -> 2C).

    x_ref : (tr, 2, Wh, 2C)  tr half-rows; axis 1 = row parity; last axis
                             packs [col parity 0 | col parity 1] channels.
    we_ref: (2C, 2Cout)      weight rows for (x0 | x2), LN gamma folded in.
    wo_ref: (2C, 2Cout)      weight rows for (x1 | x3), LN gamma folded in.
    b_ref : (1, 2Cout)       beta @ W (folded LayerNorm bias), f32.
    o_ref : (tr*Wh // g, g*2Cout)  lane-dense grouped output view.
    """
    tr, _, wh, c2 = x_ref.shape
    n_tok = tr * wh
    c2out = b_ref.shape[-1]
    inv_4c = 1.0 / (2.0 * c2)

    # Row-parity halves, flattened to (tokens, 2C).  Layout-trivial because
    # wh % 8 == 0 on this path.  Statistics stay in f32.
    xe = x_ref[:, 0, :, :].astype(jnp.float32).reshape(n_tok, c2)
    xo = x_ref[:, 1, :, :].astype(jnp.float32).reshape(n_tok, c2)

    # One-pass LayerNorm statistics over the full 4C feature (biased var).
    s = jnp.sum(xe, axis=-1, keepdims=True) + jnp.sum(xo, axis=-1, keepdims=True)
    sq = (jnp.sum(xe * xe, axis=-1, keepdims=True)
          + jnp.sum(xo * xo, axis=-1, keepdims=True))
    mean = s * inv_4c
    var = jnp.maximum(sq * inv_4c - mean * mean, 0.0)
    inv = lax.rsqrt(var + _EPS)

    mxu_dt = we_ref.dtype                      # bf16 weights -> bf16 MXU feed
    xen = ((xe - mean) * inv).astype(mxu_dt)   # normalize + cast in one pass
    xon = ((xo - mean) * inv).astype(mxu_dt)

    y = jnp.dot(xen, we_ref[...], preferred_element_type=jnp.float32)
    y = y + jnp.dot(xon, wo_ref[...], preferred_element_type=jnp.float32)
    y = y + b_ref[...]
    # Lane-dense store: group g consecutive tokens into one 128-multiple row.
    o_ref[...] = y.reshape(n_tok // g, g * c2out).astype(o_ref.dtype)


def _dense_ln_matmul_kernel(x_ref, w_ref, b_ref, o_ref, *, g):
    """LayerNorm(4C) + Linear(4C -> 2C) on a pre-gathered (tm, 4C) tile."""
    x = x_ref[...].astype(jnp.float32)
    mean = jnp.mean(x, axis=-1, keepdims=True)
    msq = jnp.mean(x * x, axis=-1, keepdims=True)
    var = jnp.maximum(msq - mean * mean, 0.0)
    inv = lax.rsqrt(var + _EPS)
    xn = ((x - mean) * inv).astype(w_ref.dtype)
    y = jnp.dot(xn, w_ref[...], preferred_element_type=jnp.float32) + b_ref[...]
    tm, c2out = y.shape
    o_ref[...] = y.reshape(tm // g, g * c2out).astype(o_ref.dtype)


def _prepare_params(gamma, beta, w_red):
    """Fold the LayerNorm affine into the reduction weight.

    Returns:
      w_aff: (4C, 2C) f32, rows ordered [x0 | x1 | x2 | x3] (torch concat
             order) with gamma folded in.
      bias : (1, 2C)  f32, beta @ W.
    """
    w_t = jnp.transpose(w_red).astype(jnp.float32)        # (4C, 2C)
    w_aff = gamma.astype(jnp.float32)[:, None] * w_t
    bias = beta.astype(jnp.float32)[None, :] @ w_t         # (1, 2C)
    return w_aff, bias


def patch_merging(x, input_resolution, gamma, beta, w_red, *,
                  mxu_dtype=None, rows_per_tile=None):
    """Forward pass of Swin PatchMerging.

    Args:
      x: (B, H*W, C)
      input_resolution: (H, W)
      gamma, beta: (4C,) LayerNorm affine parameters.
      w_red: (2C, 4C) torch-style Linear weight (out_features, in_features).
      mxu_dtype: dtype fed to the MXU (default x.dtype; pass jnp.bfloat16 to
        force the full-rate bf16 path -- accumulation stays f32).
      rows_per_tile: optional manual tile override (rows of the tiled view).
    Returns:
      (B, H*W//4, 2C) in x.dtype.
    """
    H, W = input_resolution
    B, L, C = x.shape
    assert L == H * W, "input feature has wrong size"
    assert H % 2 == 0 and W % 2 == 0, f"x size ({H}*{W}) are not even."
    assert w_red.shape == (2 * C, 4 * C)
    assert gamma.shape == (4 * C,) and beta.shape == (4 * C,)

    Hh, Wh = H // 2, W // 2
    M = B * Hh * Wh                 # output tokens
    C2, C4 = 2 * C, 4 * C
    C2out = 2 * C

    if mxu_dtype is None:
        mxu_dtype = x.dtype         # bf16 in -> bf16 MXU; f32 stays exact
    in_esize = jnp.dtype(x.dtype).itemsize
    out_esize = in_esize
    w_esize = jnp.dtype(mxu_dtype).itemsize

    vmem_limit, vmem_budget = _vmem_params()
    cparams = pltpu.CompilerParams(
        dimension_semantics=("parallel",),
        vmem_limit_bytes=vmem_limit,
    )

    # Lane-dense output grouping (g consecutive tokens per 128-multiple row).
    g = _lane_group(C2out)
    if M % g != 0:
        g = 1

    w_aff, bias = _prepare_params(gamma, beta, w_red)

    if Wh % 8 == 0:
        # ---------- fused-gather fast path (no HBM intermediate) ----------
        R = B * Hh                                  # half-rows
        x4 = x.reshape(R, 2, Wh, C2)                # free row-major view
        # Weight halves matching the packed [col0 | col1] layout per parity.
        w_even = jnp.concatenate([w_aff[0:C], w_aff[2 * C:3 * C]], 0).astype(mxu_dtype)
        w_odd = jnp.concatenate([w_aff[C:2 * C], w_aff[3 * C:4 * C]], 0).astype(mxu_dtype)

        # Conservative: assume weights may end up double-buffered.
        w_bytes = (2 * 2 * _round_up(C2, 8) * _round_up(C2out, _LANE) * w_esize
                   + 2 * 8 * _LANE * 4)

        def est(tr):
            n_tok = tr * Wh
            in_tile = tr * 2 * _round_up(Wh, 8) * _round_up(C2, _LANE) * in_esize
            out_tile = (_round_up(max(n_tok // g, 1), 8)
                        * _round_up(g * C2out, _LANE) * out_esize)
            tok2c = _round_up(n_tok, 8) * _round_up(C2, _LANE)
            tokout = _round_up(n_tok, 8) * _round_up(C2out, _LANE)
            # xe/xo + one fused temp (f32), xen/xon (mxu dtype), y acc + cast (f32).
            work = tok2c * (3 * 4 + 2 * w_esize) + 2 * tokout * 4
            return 2 * in_tile + 2 * out_tile + work + w_bytes + (4 << 20)

        if rows_per_tile is None:
            tr = _pick_tile(R, Wh, est, vmem_budget, token_multiple=g)
        else:
            tr = rows_per_tile
            assert R % tr == 0 and ((tr * Wh) % 8 == 0 or tr == R)
        n_tok = tr * Wh
        if n_tok % g != 0:
            g = 1

        def build(single_buffer_weights, gg):
            wkw = dict(pipeline_mode=pl.Buffered(1)) if single_buffer_weights else {}
            return pl.pallas_call(
                functools.partial(_merge_ln_matmul_kernel, g=gg),
                out_shape=jax.ShapeDtypeStruct((M // gg, gg * C2out), x.dtype),
                grid_spec=pltpu.PrefetchScalarGridSpec(
                    num_scalar_prefetch=0,
                    grid=(R // tr,),
                    in_specs=[
                        pl.BlockSpec((tr, 2, Wh, C2), lambda i: (i, 0, 0, 0)),
                        pl.BlockSpec((C2, C2out), lambda i: (0, 0), **wkw),
                        pl.BlockSpec((C2, C2out), lambda i: (0, 0), **wkw),
                        pl.BlockSpec((1, C2out), lambda i: (0, 0), **wkw),
                    ],
                    out_specs=pl.BlockSpec((n_tok // gg, gg * C2out),
                                           lambda i: (i, 0)),
                ),
                compiler_params=cparams,
            )

        out = _attempt(build, (x4, w_even, w_odd, bias), g)
    else:
        # ---------- general-shape fallback: XLA gather + dense kernel ------
        # TODO(synk): when W//2 is not a multiple of 8 this pays one extra HBM
        # round trip for the XLA gather/concat; the fused path could instead
        # pad Wh to a multiple of 8 with masked LN sums / stores.
        xr = x.reshape(B, Hh, 2, Wh, 2, C)
        x0 = xr[:, :, 0, :, 0, :]
        x1 = xr[:, :, 1, :, 0, :]
        x2 = xr[:, :, 0, :, 1, :]
        x3 = xr[:, :, 1, :, 1, :]
        xm = jnp.concatenate([x0, x1, x2, x3], -1).reshape(M, C4)
        w_full = w_aff.astype(mxu_dtype)

        w_bytes = (2 * _round_up(C4, 8) * _round_up(C2out, _LANE) * w_esize
                   + 2 * 8 * _LANE * 4)

        def est(tm):
            in_tile = _round_up(tm, 8) * _round_up(C4, _LANE) * in_esize
            out_tile = (_round_up(max(tm // g, 1), 8)
                        * _round_up(g * C2out, _LANE) * out_esize)
            tok4c = _round_up(tm, 8) * _round_up(C4, _LANE)
            tokout = _round_up(tm, 8) * _round_up(C2out, _LANE)
            work = tok4c * (2 * 4 + w_esize) + 2 * tokout * 4
            return 2 * in_tile + 2 * out_tile + work + w_bytes + (4 << 20)

        if rows_per_tile is None:
            tm = _pick_tile(M, 1, est, vmem_budget, token_multiple=g)
        else:
            tm = rows_per_tile
            assert M % tm == 0 and (tm % 8 == 0 or tm == M)
        if tm % g != 0:
            g = 1

        def build(single_buffer_weights, gg):
            wkw = dict(pipeline_mode=pl.Buffered(1)) if single_buffer_weights else {}
            return pl.pallas_call(
                functools.partial(_dense_ln_matmul_kernel, g=gg),
                out_shape=jax.ShapeDtypeStruct((M // gg, gg * C2out), x.dtype),
                grid_spec=pltpu.PrefetchScalarGridSpec(
                    num_scalar_prefetch=0,
                    grid=(M // tm,),
                    in_specs=[
                        pl.BlockSpec((tm, C4), lambda i: (i, 0)),
                        pl.BlockSpec((C4, C2out), lambda i: (0, 0), **wkw),
                        pl.BlockSpec((1, C2out), lambda i: (0, 0), **wkw),
                    ],
                    out_specs=pl.BlockSpec((tm // gg, gg * C2out),
                                           lambda i: (i, 0)),
                ),
                compiler_params=cparams,
            )

        out = _attempt(build, (xm, w_full, bias), g)

    return out.reshape(B, Hh * Wh, C2out)


def _reference(x, input_resolution, gamma, beta, w_red):
    """Pure-JAX f32 reference mirroring the PyTorch forward."""
    H, W = input_resolution
    B, L, C = x.shape
    xr = x.astype(jnp.float32).reshape(B, H, W, C)
    x0 = xr[:, 0::2, 0::2, :]
    x1 = xr[:, 1::2, 0::2, :]
    x2 = xr[:, 0::2, 1::2, :]
    x3 = xr[:, 1::2, 1::2, :]
    xm = jnp.concatenate([x0, x1, x2, x3], -1).reshape(B, -1, 4 * C)
    mean = jnp.mean(xm, axis=-1, keepdims=True)
    var = jnp.mean((xm - mean) ** 2, axis=-1, keepdims=True)
    xn = (xm - mean) / jnp.sqrt(var + _EPS) * gamma + beta
    return xn @ jnp.transpose(w_red).astype(jnp.float32)


if __name__ == "__main__":
    key = jax.random.PRNGKey(0)
    k_x, k_g, k_b, k_w = jax.random.split(key, 4)

    # Small shapes consistent with the module: B=2, H=W=16, dim(C)=32.
    B, H, W, C = 2, 16, 16, 32
    x = jax.random.normal(k_x, (B, H * W, C), dtype=jnp.float32)
    gamma = 1.0 + 0.02 * jax.random.normal(k_g, (4 * C,), dtype=jnp.float32)
    beta = 0.02 * jax.random.normal(k_b, (4 * C,), dtype=jnp.float32)
    w_red = 0.05 * jax.random.normal(k_w, (2 * C, 4 * C), dtype=jnp.float32)

    ref = _reference(x, (H, W), gamma, beta, w_red)

    # 1) Fused-gather path, f32 MXU feed (exactness check).
    out = jax.block_until_ready(patch_merging(x, (H, W), gamma, beta, w_red))
    assert out.shape == (B, (H // 2) * (W // 2), 2 * C), out.shape
    assert jnp.allclose(out, ref, atol=1e-4, rtol=1e-4), "f32 mismatch vs reference"

    # 2) Fused-gather path, bf16 inputs -> full-rate bf16 MXU feed.
    out_bf = jax.block_until_ready(
        patch_merging(x.astype(jnp.bfloat16), (H, W), gamma, beta, w_red,
                      mxu_dtype=jnp.bfloat16))
    assert out_bf.dtype == jnp.bfloat16
    assert jnp.allclose(out_bf.astype(jnp.float32), ref, atol=1e-1, rtol=1e-1), \
        "bf16 mismatch vs reference"

    # 3) General-shape fallback (W//2 not a multiple of 8).
    H2 = W2 = 6
    x_small = jax.random.normal(k_x, (B, H2 * W2, C), dtype=jnp.float32)
    out2 = jax.block_until_ready(patch_merging(x_small, (H2, W2), gamma, beta, w_red))
    ref2 = _reference(x_small, (H2, W2), gamma, beta, w_red)
    assert out2.shape == (B, (H2 // 2) * (W2 // 2), 2 * C), out2.shape
    assert jnp.allclose(out2, ref2, atol=1e-4, rtol=1e-4), "fallback mismatch"

    print("KERNEL_OK")
</pallas_src>

<mosaic_0001>
module attributes {stable_mosaic.version = 11 : i64} {
  func.func @_merge_ln_matmul_kernel(%arg0: i32, %arg1: memref<4x2x8x64xf32, #tpu.memory_space<vmem>>, %arg2: memref<64x64xf32, #tpu.memory_space<vmem>>, %arg3: memref<64x64xf32, #tpu.memory_space<vmem>>, %arg4: memref<1x64xf32, #tpu.memory_space<vmem>>, %arg5: memref<16x128xf32, #tpu.memory_space<vmem>>) attributes {dimension_semantics = [#tpu.dimension_semantics<parallel>], iteration_bounds = array<i64: 4>, scalar_prefetch = 0 : i64, scratch_operands = 0 : i64, tpu.core_type = #tpu.core_type<tc>, window_params = [{transform_indices = @transform_0, window_bounds = array<i64: 4, 2, 8, 64>}, {pipeline_mode = #tpu.pipeline_mode<synchronous>, transform_indices = @transform_1, window_bounds = array<i64: 64, 64>}, {pipeline_mode = #tpu.pipeline_mode<synchronous>, transform_indices = @transform_2, window_bounds = array<i64: 64, 64>}, {pipeline_mode = #tpu.pipeline_mode<synchronous>, transform_indices = @transform_3, window_bounds = array<i64: 1, 64>}, {transform_indices = @transform_4, window_bounds = array<i64: 16, 128>}]} {
    %c0 = arith.constant 0 : index
    %c0_0 = arith.constant 0 : index
    %c0_1 = arith.constant 0 : index
    %c0_2 = arith.constant 0 : index
    %0 = vector.load %arg1[%c0, %c0_0, %c0_1, %c0_2] : memref<4x2x8x64xf32, #tpu.memory_space<vmem>>, vector<4x1x8x64xf32>
    %1 = vector.shape_cast %0 : vector<4x1x8x64xf32> to vector<4x8x64xf32>
    %2 = vector.shape_cast %1 : vector<4x8x64xf32> to vector<32x64xf32>
    %c0_3 = arith.constant 0 : index
    %c1 = arith.constant 1 : index
    %c0_4 = arith.constant 0 : index
    %c0_5 = arith.constant 0 : index
    %3 = vector.load %arg1[%c0_3, %c1, %c0_4, %c0_5] : memref<4x2x8x64xf32, #tpu.memory_space<vmem>>, vector<4x1x8x64xf32>
    %4 = vector.shape_cast %3 : vector<4x1x8x64xf32> to vector<4x8x64xf32>
    %5 = vector.shape_cast %4 : vector<4x8x64xf32> to vector<32x64xf32>
    %cst = arith.constant dense<0.000000e+00> : vector<32xf32>
    %6 = vector.multi_reduction <add>, %2, %cst [1] : vector<32x64xf32> to vector<32xf32>
    %7 = vector.shape_cast %6 : vector<32xf32> to vector<32x1xf32>
    %cst_6 = arith.constant dense<0.000000e+00> : vector<32xf32>
    %8 = vector.multi_reduction <add>, %5, %cst_6 [1] : vector<32x64xf32> to vector<32xf32>
    %9 = vector.shape_cast %8 : vector<32xf32> to vector<32x1xf32>
    %10 = arith.addf %7, %9 : vector<32x1xf32>
    %11 = arith.mulf %2, %2 : vector<32x64xf32>
    %cst_7 = arith.constant dense<0.000000e+00> : vector<32xf32>
    %12 = vector.multi_reduction <add>, %11, %cst_7 [1] : vector<32x64xf32> to vector<32xf32>
    %13 = vector.shape_cast %12 : vector<32xf32> to vector<32x1xf32>
    %14 = arith.mulf %5, %5 : vector<32x64xf32>
    %cst_8 = arith.constant dense<0.000000e+00> : vector<32xf32>
    %15 = vector.multi_reduction <add>, %14, %cst_8 [1] : vector<32x64xf32> to vector<32xf32>
    %16 = vector.shape_cast %15 : vector<32xf32> to vector<32x1xf32>
    %17 = arith.addf %13, %16 : vector<32x1xf32>
    %cst_9 = arith.constant 7.812500e-03 : f32
    %18 = vector.broadcast %cst_9 : f32 to vector<32x1xf32>
    %19 = arith.mulf %10, %18 : vector<32x1xf32>
    %cst_10 = arith.constant 7.812500e-03 : f32
    %20 = vector.broadcast %cst_10 : f32 to vector<32x1xf32>
    %21 = arith.mulf %17, %20 : vector<32x1xf32>
    %22 = arith.mulf %19, %19 : vector<32x1xf32>
    %23 = arith.subf %21, %22 : vector<32x1xf32>
    %cst_11 = arith.constant 0.000000e+00 : f32
    %24 = vector.broadcast %cst_11 : f32 to vector<32x1xf32>
    %25 = arith.maximumf %23, %24 : vector<32x1xf32>
    %cst_12 = arith.constant 9.99999974E-6 : f32
    %26 = vector.broadcast %cst_12 : f32 to vector<32x1xf32>
    %27 = arith.addf %25, %26 : vector<32x1xf32>
    %28 = math.rsqrt %27 : vector<32x1xf32>
    %29 = vector.broadcast %19 : vector<32x1xf32> to vector<32x64xf32>
    %30 = arith.subf %2, %29 : vector<32x64xf32>
    %31 = vector.broadcast %28 : vector<32x1xf32> to vector<32x64xf32>
    %32 = arith.mulf %30, %31 : vector<32x64xf32>
    %33 = vector.broadcast %19 : vector<32x1xf32> to vector<32x64xf32>
    %34 = arith.subf %5, %33 : vector<32x64xf32>
    %35 = vector.broadcast %28 : vector<32x1xf32> to vector<32x64xf32>
    %36 = arith.mulf %34, %35 : vector<32x64xf32>
    %c0_13 = arith.constant 0 : index
    %c0_14 = arith.constant 0 : index
    %37 = vector.load %arg2[%c0_13, %c0_14] : memref<64x64xf32, #tpu.memory_space<vmem>>, vector<64x64xf32>
    %cst_15 = arith.constant dense<0.000000e+00> : vector<32x64xf32>
    %38 = tpu.matmul %32, %37, %cst_15 {dimension_numbers = #tpu.dot_dimension_numbers<[1], [0], [0], [1], [0, 0, 1, 1], [], []>} : vector<32x64xf32>, vector<64x64xf32>, vector<32x64xf32> -> vector<32x64xf32>
    %c0_16 = arith.constant 0 : index
    %c0_17 = arith.constant 0 : index
    %39 = vector.load %arg3[%c0_16, %c0_17] : memref<64x64xf32, #tpu.memory_space<vmem>>, vector<64x64xf32>
    %cst_18 = arith.constant dense<0.000000e+00> : vector<32x64xf32>
    %40 = tpu.matmul %36, %39, %cst_18 {dimension_numbers = #tpu.dot_dimension_numbers<[1], [0], [0], [1], [0, 0, 1, 1], [], []>} : vector<32x64xf32>, vector<64x64xf32>, vector<32x64xf32> -> vector<32x64xf32>
    %41 = arith.addf %38, %40 : vector<32x64xf32>
    %c0_19 = arith.constant 0 : index
    %c0_20 = arith.constant 0 : index
    %42 = vector.load %arg4[%c0_19, %c0_20] : memref<1x64xf32, #tpu.memory_space<vmem>>, vector<1x64xf32>
    %43 = vector.broadcast %42 : vector<1x64xf32> to vector<32x64xf32>
    %44 = arith.addf %41, %43 : vector<32x64xf32>
    %45 = vector.shape_cast %44 : vector<32x64xf32> to vector<16x128xf32>
    %c0_21 = arith.constant 0 : index
    %c0_22 = arith.constant 0 : index
    %46 = vector.load %arg5[%c0_21, %c0_22] : memref<16x128xf32, #tpu.memory_space<vmem>>, vector<16x128xf32>
    tpu.vector_store %arg5[%c0_21, %c0_22], %45 {strides = array<i32>} : memref<16x128xf32, #tpu.memory_space<vmem>>, vector<16x128xf32>,
    return
  }
  func.func @transform_0(%arg0: i32) -> (i32, i32, i32, i32) {
    %c0_i32 = arith.constant 0 : i32
    %c0_i32_0 = arith.constant 0 : i32
    %c0_i32_1 = arith.constant 0 : i32
    %c0_i32_2 = arith.constant 0 : i32
    return %arg0, %c0_i32, %c0_i32_0, %c0_i32_1 : i32, i32, i32, i32
  }
  func.func @transform_1(%arg0: i32) -> (i32, i32) {
    %c0_i32 = arith.constant 0 : i32
    %c0_i32_0 = arith.constant 0 : i32
    %c0_i32_1 = arith.constant 0 : i32
    return %c0_i32, %c0_i32_0 : i32, i32
  }
  func.func @transform_2(%arg0: i32) -> (i32, i32) {
    %c0_i32 = arith.constant 0 : i32
    %c0_i32_0 = arith.constant 0 : i32
    %c0_i32_1 = arith.constant 0 : i32
    return %c0_i32, %c0_i32_0 : i32, i32
  }
  func.func @transform_3(%arg0: i32) -> (i32, i32) {
    %c0_i32 = arith.constant 0 : i32
    %c0_i32_0 = arith.constant 0 : i32
    %c0_i32_1 = arith.constant 0 : i32
    return %c0_i32, %c0_i32_0 : i32, i32
  }
  func.func @transform_4(%arg0: i32) -> (i32, i32) {
    %c0_i32 = arith.constant 0 : i32
    %c0_i32_0 = arith.constant 0 : i32
    return %arg0, %c0_i32 : i32, i32
  }
}

module attributes {stable_mosaic.version = 11 : i64} {
  func.func @_merge_ln_matmul_kernel(%arg0: i32, %arg1: memref<4x2x8x64xf32, #tpu.memory_space<vmem>>, %arg2: memref<64x64xf32, #tpu.memory_space<vmem>>, %arg3: memref<64x64xf32, #tpu.memory_space<vmem>>, %arg4: memref<1x64xf32, #tpu.memory_space<vmem>>, %arg5: memref<16x128xf32, #tpu.memory_space<vmem>>) attributes {dimension_semantics = [#tpu.dimension_semantics<parallel>], iteration_bounds = array<i64: 4>, scalar_prefetch = 0 : i64, scratch_operands = 0 : i64, tpu.core_type = #tpu.core_type<tc>, window_params = [{transform_indices = @transform_0, window_bounds = array<i64: 4, 2, 8, 64>}, {pipeline_mode = #tpu.pipeline_mode<synchronous>, transform_indices = @transform_1, window_bounds = array<i64: 64, 64>}, {pipeline_mode = #tpu.pipeline_mode<synchronous>, transform_indices = @transform_2, window_bounds = array<i64: 64, 64>}, {pipeline_mode = #tpu.pipeline_mode<synchronous>, transform_indices = @transform_3, window_bounds = array<i64: 1, 64>}, {transform_indices = @transform_4, window_bounds = array<i64: 16, 128>}]} {
    %c0 = arith.constant 0 : index
    %c0_0 = arith.constant 0 : index
    %c0_1 = arith.constant 0 : index
    %c0_2 = arith.constant 0 : index
    %0 = vector.load %arg1[%c0, %c0_0, %c0_1, %c0_2] : memref<4x2x8x64xf32, #tpu.memory_space<vmem>>, vector<4x1x8x64xf32>
    %1 = vector.shape_cast %0 : vector<4x1x8x64xf32> to vector<4x8x64xf32>
    %2 = vector.shape_cast %1 : vector<4x8x64xf32> to vector<32x64xf32>
    %c0_3 = arith.constant 0 : index
    %c1 = arith.constant 1 : index
    %c0_4 = arith.constant 0 : index
    %c0_5 = arith.constant 0 : index
    %3 = vector.load %arg1[%c0_3, %c1, %c0_4, %c0_5] : memref<4x2x8x64xf32, #tpu.memory_space<vmem>>, vector<4x1x8x64xf32>
    %4 = vector.shape_cast %3 : vector<4x1x8x64xf32> to vector<4x8x64xf32>
    %5 = vector.shape_cast %4 : vector<4x8x64xf32> to vector<32x64xf32>
    %cst = arith.constant dense<0.000000e+00> : vector<32xf32>
    %6 = vector.multi_reduction <add>, %2, %cst [1] : vector<32x64xf32> to vector<32xf32>
    %7 = vector.shape_cast %6 : vector<32xf32> to vector<32x1xf32>
    %cst_6 = arith.constant dense<0.000000e+00> : vector<32xf32>
    %8 = vector.multi_reduction <add>, %5, %cst_6 [1] : vector<32x64xf32> to vector<32xf32>
    %9 = vector.shape_cast %8 : vector<32xf32> to vector<32x1xf32>
    %10 = arith.addf %7, %9 : vector<32x1xf32>
    %11 = arith.mulf %2, %2 : vector<32x64xf32>
    %cst_7 = arith.constant dense<0.000000e+00> : vector<32xf32>
    %12 = vector.multi_reduction <add>, %11, %cst_7 [1] : vector<32x64xf32> to vector<32xf32>
    %13 = vector.shape_cast %12 : vector<32xf32> to vector<32x1xf32>
    %14 = arith.mulf %5, %5 : vector<32x64xf32>
    %cst_8 = arith.constant dense<0.000000e+00> : vector<32xf32>
    %15 = vector.multi_reduction <add>, %14, %cst_8 [1] : vector<32x64xf32> to vector<32xf32>
    %16 = vector.shape_cast %15 : vector<32xf32> to vector<32x1xf32>
    %17 = arith.addf %13, %16 : vector<32x1xf32>
    %cst_9 = arith.constant 7.812500e-03 : f32
    %18 = vector.broadcast %cst_9 : f32 to vector<32x1xf32>
    %19 = arith.mulf %10, %18 : vector<32x1xf32>
    %cst_10 = arith.constant 7.812500e-03 : f32
    %20 = vector.broadcast %cst_10 : f32 to vector<32x1xf32>
    %21 = arith.mulf %17, %20 : vector<32x1xf32>
    %22 = arith.mulf %19, %19 : vector<32x1xf32>
    %23 = arith.subf %21, %22 : vector<32x1xf32>
    %cst_11 = arith.constant 0.000000e+00 : f32
    %24 = vector.broadcast %cst_11 : f32 to vector<32x1xf32>
    %25 = arith.maximumf %23, %24 : vector<32x1xf32>
    %cst_12 = arith.constant 9.99999974E-6 : f32
    %26 = vector.broadcast %cst_12 : f32 to vector<32x1xf32>
    %27 = arith.addf %25, %26 : vector<32x1xf32>
    %28 = math.rsqrt %27 : vector<32x1xf32>
    %29 = vector.broadcast %19 : vector<32x1xf32> to vector<32x64xf32>
    %30 = arith.subf %2, %29 : vector<32x64xf32>
    %31 = vector.broadcast %28 : vector<32x1xf32> to vector<32x64xf32>
    %32 = arith.mulf %30, %31 : vector<32x64xf32>
    %33 = vector.broadcast %19 : vector<32x1xf32> to vector<32x64xf32>
    %34 = arith.subf %5, %33 : vector<32x64xf32>
    %35 = vector.broadcast %28 : vector<32x1xf32> to vector<32x64xf32>
    %36 = arith.mulf %34, %35 : vector<32x64xf32>
    %c0_13 = arith.constant 0 : index
    %c0_14 = arith.constant 0 : index
    %37 = vector.load %arg2[%c0_13, %c0_14] : memref<64x64xf32, #tpu.memory_space<vmem>>, vector<64x64xf32>
    %cst_15 = arith.constant dense<0.000000e+00> : vector<32x64xf32>
    %38 = tpu.matmul %32, %37, %cst_15 {dimension_numbers = #tpu.dot_dimension_numbers<[1], [0], [0], [1], [0, 0, 1, 1], [], []>} : vector<32x64xf32>, vector<64x64xf32>, vector<32x64xf32> -> vector<32x64xf32>
    %c0_16 = arith.constant 0 : index
    %c0_17 = arith.constant 0 : index
    %39 = vector.load %arg3[%c0_16, %c0_17] : memref<64x64xf32, #tpu.memory_space<vmem>>, vector<64x64xf32>
    %cst_18 = arith.constant dense<0.000000e+00> : vector<32x64xf32>
    %40 = tpu.matmul %36, %39, %cst_18 {dimension_numbers = #tpu.dot_dimension_numbers<[1], [0], [0], [1], [0, 0, 1, 1], [], []>} : vector<32x64xf32>, vector<64x64xf32>, vector<32x64xf32> -> vector<32x64xf32>
    %41 = arith.addf %38, %40 : vector<32x64xf32>
    %c0_19 = arith.constant 0 : index
    %c0_20 = arith.constant 0 : index
    %42 = vector.load %arg4[%c0_19, %c0_20] : memref<1x64xf32, #tpu.memory_space<vmem>>, vector<1x64xf32>
    %43 = vector.broadcast %42 : vector<1x64xf32> to vector<32x64xf32>
    %44 = arith.addf %41, %43 : vector<32x64xf32>
    %45 = vector.shape_cast %44 : vector<32x64xf32> to vector<16x128xf32>
    %c0_21 = arith.constant 0 : index
    %c0_22 = arith.constant 0 : index
    %46 = vector.load %arg5[%c0_21, %c0_22] : memref<16x128xf32, #tpu.memory_space<vmem>>, vector<16x128xf32>
    tpu.vector_store %arg5[%c0_21, %c0_22], %45 {strides = array<i32>} : memref<16x128xf32, #tpu.memory_space<vmem>>, vector<16x128xf32>,
    return
  }
  func.func @transform_0(%arg0: i32) -> (i32, i32, i32, i32) {
    %c0_i32 = arith.constant 0 : i32
    %c0_i32_0 = arith.constant 0 : i32
    %c0_i32_1 = arith.constant 0 : i32
    %c0_i32_2 = arith.constant 0 : i32
    return %arg0, %c0_i32, %c0_i32_0, %c0_i32_1 : i32, i32, i32, i32
  }
  func.func @transform_1(%arg0: i32) -> (i32, i32) {
    %c0_i32 = arith.constant 0 : i32
    %c0_i32_0 = arith.constant 0 : i32
    %c0_i32_1 = arith.constant 0 : i32
    return %c0_i32, %c0_i32_0 : i32, i32
  }
  func.func @transform_2(%arg0: i32) -> (i32, i32) {
    %c0_i32 = arith.constant 0 : i32
    %c0_i32_0 = arith.constant 0 : i32
    %c0_i32_1 = arith.constant 0 : i32
    return %c0_i32, %c0_i32_0 : i32, i32
  }
  func.func @transform_3(%arg0: i32) -> (i32, i32) {
    %c0_i32 = arith.constant 0 : i32
    %c0_i32_0 = arith.constant 0 : i32
    %c0_i32_1 = arith.constant 0 : i32
    return %c0_i32, %c0_i32_0 : i32, i32
  }
  func.func @transform_4(%arg0: i32) -> (i32, i32) {
    %c0_i32 = arith.constant 0 : i32
    %c0_i32_0 = arith.constant 0 : i32
    return %arg0, %c0_i32 : i32, i32
  }
}

module attributes {stable_mosaic.version = 11 : i64} {
  func.func @_merge_ln_matmul_kernel(%arg0: i32, %arg1: memref<4x2x8x64xf32, #tpu.memory_space<vmem>>, %arg2: memref<64x64xf32, #tpu.memory_space<vmem>>, %arg3: memref<64x64xf32, #tpu.memory_space<vmem>>, %arg4: memref<1x64xf32, #tpu.memory_space<vmem>>, %arg5: memref<32x64xf32, #tpu.memory_space<vmem>>) attributes {dimension_semantics = [#tpu.dimension_semantics<parallel>], iteration_bounds = array<i64: 4>, scalar_prefetch = 0 : i64, scratch_operands = 0 : i64, tpu.core_type = #tpu.core_type<tc>, window_params = [{transform_indices = @transform_0, window_bounds = array<i64: 4, 2, 8, 64>}, {pipeline_mode = #tpu.pipeline_mode<synchronous>, transform_indices = @transform_1, window_bounds = array<i64: 64, 64>}, {pipeline_mode = #tpu.pipeline_mode<synchronous>, transform_indices = @transform_2, window_bounds = array<i64: 64, 64>}, {pipeline_mode = #tpu.pipeline_mode<synchronous>, transform_indices = @transform_3, window_bounds = array<i64: 1, 64>}, {transform_indices = @transform_4, window_bounds = array<i64: 32, 64>}]} {
    %c0 = arith.constant 0 : index
    %c0_0 = arith.constant 0 : index
    %c0_1 = arith.constant 0 : index
    %c0_2 = arith.constant 0 : index
    %0 = vector.load %arg1[%c0, %c0_0, %c0_1, %c0_2] : memref<4x2x8x64xf32, #tpu.memory_space<vmem>>, vector<4x1x8x64xf32>
    %1 = vector.shape_cast %0 : vector<4x1x8x64xf32> to vector<4x8x64xf32>
    %2 = vector.shape_cast %1 : vector<4x8x64xf32> to vector<32x64xf32>
    %c0_3 = arith.constant 0 : index
    %c1 = arith.constant 1 : index
    %c0_4 = arith.constant 0 : index
    %c0_5 = arith.constant 0 : index
    %3 = vector.load %arg1[%c0_3, %c1, %c0_4, %c0_5] : memref<4x2x8x64xf32, #tpu.memory_space<vmem>>, vector<4x1x8x64xf32>
    %4 = vector.shape_cast %3 : vector<4x1x8x64xf32> to vector<4x8x64xf32>
    %5 = vector.shape_cast %4 : vector<4x8x64xf32> to vector<32x64xf32>
    %cst = arith.constant dense<0.000000e+00> : vector<32xf32>
    %6 = vector.multi_reduction <add>, %2, %cst [1] : vector<32x64xf32> to vector<32xf32>
    %7 = vector.shape_cast %6 : vector<32xf32> to vector<32x1xf32>
    %cst_6 = arith.constant dense<0.000000e+00> : vector<32xf32>
    %8 = vector.multi_reduction <add>, %5, %cst_6 [1] : vector<32x64xf32> to vector<32xf32>
    %9 = vector.shape_cast %8 : vector<32xf32> to vector<32x1xf32>
    %10 = arith.addf %7, %9 : vector<32x1xf32>
    %11 = arith.mulf %2, %2 : vector<32x64xf32>
    %cst_7 = arith.constant dense<0.000000e+00> : vector<32xf32>
    %12 = vector.multi_reduction <add>, %11, %cst_7 [1] : vector<32x64xf32> to vector<32xf32>
    %13 = vector.shape_cast %12 : vector<32xf32> to vector<32x1xf32>
    %14 = arith.mulf %5, %5 : vector<32x64xf32>
    %cst_8 = arith.constant dense<0.000000e+00> : vector<32xf32>
    %15 = vector.multi_reduction <add>, %14, %cst_8 [1] : vector<32x64xf32> to vector<32xf32>
    %16 = vector.shape_cast %15 : vector<32xf32> to vector<32x1xf32>
    %17 = arith.addf %13, %16 : vector<32x1xf32>
    %cst_9 = arith.constant 7.812500e-03 : f32
    %18 = vector.broadcast %cst_9 : f32 to vector<32x1xf32>
    %19 = arith.mulf %10, %18 : vector<32x1xf32>
    %cst_10 = arith.constant 7.812500e-03 : f32
    %20 = vector.broadcast %cst_10 : f32 to vector<32x1xf32>
    %21 = arith.mulf %17, %20 : vector<32x1xf32>
    %22 = arith.mulf %19, %19 : vector<32x1xf32>
    %23 = arith.subf %21, %22 : vector<32x1xf32>
    %cst_11 = arith.constant 0.000000e+00 : f32
    %24 = vector.broadcast %cst_11 : f32 to vector<32x1xf32>
    %25 = arith.maximumf %23, %24 : vector<32x1xf32>
    %cst_12 = arith.constant 9.99999974E-6 : f32
    %26 = vector.broadcast %cst_12 : f32 to vector<32x1xf32>
    %27 = arith.addf %25, %26 : vector<32x1xf32>
    %28 = math.rsqrt %27 : vector<32x1xf32>
    %29 = vector.broadcast %19 : vector<32x1xf32> to vector<32x64xf32>
    %30 = arith.subf %2, %29 : vector<32x64xf32>
    %31 = vector.broadcast %28 : vector<32x1xf32> to vector<32x64xf32>
    %32 = arith.mulf %30, %31 : vector<32x64xf32>
    %33 = vector.broadcast %19 : vector<32x1xf32> to vector<32x64xf32>
    %34 = arith.subf %5, %33 : vector<32x64xf32>
    %35 = vector.broadcast %28 : vector<32x1xf32> to vector<32x64xf32>
    %36 = arith.mulf %34, %35 : vector<32x64xf32>
    %c0_13 = arith.constant 0 : index
    %c0_14 = arith.constant 0 : index
    %37 = vector.load %arg2[%c0_13, %c0_14] : memref<64x64xf32, #tpu.memory_space<vmem>>, vector<64x64xf32>
    %cst_15 = arith.constant dense<0.000000e+00> : vector<32x64xf32>
    %38 = tpu.matmul %32, %37, %cst_15 {dimension_numbers = #tpu.dot_dimension_numbers<[1], [0], [0], [1], [0, 0, 1, 1], [], []>} : vector<32x64xf32>, vector<64x64xf32>, vector<32x64xf32> -> vector<32x64xf32>
    %c0_16 = arith.constant 0 : index
    %c0_17 = arith.constant 0 : index
    %39 = vector.load %arg3[%c0_16, %c0_17] : memref<64x64xf32, #tpu.memory_space<vmem>>, vector<64x64xf32>
    %cst_18 = arith.constant dense<0.000000e+00> : vector<32x64xf32>
    %40 = tpu.matmul %36, %39, %cst_18 {dimension_numbers = #tpu.dot_dimension_numbers<[1], [0], [0], [1], [0, 0, 1, 1], [], []>} : vector<32x64xf32>, vector<64x64xf32>, vector<32x64xf32> -> vector<32x64xf32>
    %41 = arith.addf %38, %40 : vector<32x64xf32>
    %c0_19 = arith.constant 0 : index
    %c0_20 = arith.constant 0 : index
    %42 = vector.load %arg4[%c0_19, %c0_20] : memref<1x64xf32, #tpu.memory_space<vmem>>, vector<1x64xf32>
    %43 = vector.broadcast %42 : vector<1x64xf32> to vector<32x64xf32>
    %44 = arith.addf %41, %43 : vector<32x64xf32>
    %c0_21 = arith.constant 0 : index
    %c0_22 = arith.constant 0 : index
    %45 = vector.load %arg5[%c0_21, %c0_22] : memref<32x64xf32, #tpu.memory_space<vmem>>, vector<32x64xf32>
    tpu.vector_store %arg5[%c0_21, %c0_22], %44 {strides = array<i32>} : memref<32x64xf32, #tpu.memory_space<vmem>>, vector<32x64xf32>,
    return
  }
  func.func @transform_0(%arg0: i32) -> (i32, i32, i32, i32) {
    %c0_i32 = arith.constant 0 : i32
    %c0_i32_0 = arith.constant 0 : i32
    %c0_i32_1 = arith.constant 0 : i32
    %c0_i32_2 = arith.constant 0 : i32
    return %arg0, %c0_i32, %c0_i32_0, %c0_i32_1 : i32, i32, i32, i32
  }
  func.func @transform_1(%arg0: i32) -> (i32, i32) {
    %c0_i32 = arith.constant 0 : i32
    %c0_i32_0 = arith.constant 0 : i32
    %c0_i32_1 = arith.constant 0 : i32
    return %c0_i32, %c0_i32_0 : i32, i32
  }
  func.func @transform_2(%arg0: i32) -> (i32, i32) {
    %c0_i32 = arith.constant 0 : i32
    %c0_i32_0 = arith.constant 0 : i32
    %c0_i32_1 = arith.constant 0 : i32
    return %c0_i32, %c0_i32_0 : i32, i32
  }
  func.func @transform_3(%arg0: i32) -> (i32, i32) {
    %c0_i32 = arith.constant 0 : i32
    %c0_i32_0 = arith.constant 0 : i32
    %c0_i32_1 = arith.constant 0 : i32
    return %c0_i32, %c0_i32_0 : i32, i32
  }
  func.func @transform_4(%arg0: i32) -> (i32, i32) {
    %c0_i32 = arith.constant 0 : i32
    %c0_i32_0 = arith.constant 0 : i32
    return %arg0, %c0_i32 : i32, i32
  }
}

module attributes {stable_mosaic.version = 11 : i64} {
  func.func @_merge_ln_matmul_kernel(%arg0: i32, %arg1: memref<4x2x8x64xf32, #tpu.memory_space<vmem>>, %arg2: memref<64x64xf32, #tpu.memory_space<vmem>>, %arg3: memref<64x64xf32, #tpu.memory_space<vmem>>, %arg4: memref<1x64xf32, #tpu.memory_space<vmem>>, %arg5: memref<32x64xf32, #tpu.memory_space<vmem>>) attributes {dimension_semantics = [#tpu.dimension_semantics<parallel>], iteration_bounds = array<i64: 4>, scalar_prefetch = 0 : i64, scratch_operands = 0 : i64, tpu.core_type = #tpu.core_type<tc>, window_params = [{transform_indices = @transform_0, window_bounds = array<i64: 4, 2, 8, 64>}, {pipeline_mode = #tpu.pipeline_mode<synchronous>, transform_indices = @transform_1, window_bounds = array<i64: 64, 64>}, {pipeline_mode = #tpu.pipeline_mode<synchronous>, transform_indices = @transform_2, window_bounds = array<i64: 64, 64>}, {pipeline_mode = #tpu.pipeline_mode<synchronous>, transform_indices = @transform_3, window_bounds = array<i64: 1, 64>}, {transform_indices = @transform_4, window_bounds = array<i64: 32, 64>}]} {
    %c0 = arith.constant 0 : index
    %c0_0 = arith.constant 0 : index
    %c0_1 = arith.constant 0 : index
    %c0_2 = arith.constant 0 : index
    %0 = vector.load %arg1[%c0, %c0_0, %c0_1, %c0_2] : memref<4x2x8x64xf32, #tpu.memory_space<vmem>>, vector<4x1x8x64xf32>
    %1 = vector.shape_cast %0 : vector<4x1x8x64xf32> to vector<4x8x64xf32>
    %2 = vector.shape_cast %1 : vector<4x8x64xf32> to vector<32x64xf32>
    %c0_3 = arith.constant 0 : index
    %c1 = arith.constant 1 : index
    %c0_4 = arith.constant 0 : index
    %c0_5 = arith.constant 0 : index
    %3 = vector.load %arg1[%c0_3, %c1, %c0_4, %c0_5] : memref<4x2x8x64xf32, #tpu.memory_space<vmem>>, vector<4x1x8x64xf32>
    %4 = vector.shape_cast %3 : vector<4x1x8x64xf32> to vector<4x8x64xf32>
    %5 = vector.shape_cast %4 : vector<4x8x64xf32> to vector<32x64xf32>
    %cst = arith.constant dense<0.000000e+00> : vector<32xf32>
    %6 = vector.multi_reduction <add>, %2, %cst [1] : vector<32x64xf32> to vector<32xf32>
    %7 = vector.shape_cast %6 : vector<32xf32> to vector<32x1xf32>
    %cst_6 = arith.constant dense<0.000000e+00> : vector<32xf32>
    %8 = vector.multi_reduction <add>, %5, %cst_6 [1] : vector<32x64xf32> to vector<32xf32>
    %9 = vector.shape_cast %8 : vector<32xf32> to vector<32x1xf32>
    %10 = arith.addf %7, %9 : vector<32x1xf32>
    %11 = arith.mulf %2, %2 : vector<32x64xf32>
    %cst_7 = arith.constant dense<0.000000e+00> : vector<32xf32>
    %12 = vector.multi_reduction <add>, %11, %cst_7 [1] : vector<32x64xf32> to vector<32xf32>
    %13 = vector.shape_cast %12 : vector<32xf32> to vector<32x1xf32>
    %14 = arith.mulf %5, %5 : vector<32x64xf32>
    %cst_8 = arith.constant dense<0.000000e+00> : vector<32xf32>
    %15 = vector.multi_reduction <add>, %14, %cst_8 [1] : vector<32x64xf32> to vector<32xf32>
    %16 = vector.shape_cast %15 : vector<32xf32> to vector<32x1xf32>
    %17 = arith.addf %13, %16 : vector<32x1xf32>
    %cst_9 = arith.constant 7.812500e-03 : f32
    %18 = vector.broadcast %cst_9 : f32 to vector<32x1xf32>
    %19 = arith.mulf %10, %18 : vector<32x1xf32>
    %cst_10 = arith.constant 7.812500e-03 : f32
    %20 = vector.broadcast %cst_10 : f32 to vector<32x1xf32>
    %21 = arith.mulf %17, %20 : vector<32x1xf32>
    %22 = arith.mulf %19, %19 : vector<32x1xf32>
    %23 = arith.subf %21, %22 : vector<32x1xf32>
    %cst_11 = arith.constant 0.000000e+00 : f32
    %24 = vector.broadcast %cst_11 : f32 to vector<32x1xf32>
    %25 = arith.maximumf %23, %24 : vector<32x1xf32>
    %cst_12 = arith.constant 9.99999974E-6 : f32
    %26 = vector.broadcast %cst_12 : f32 to vector<32x1xf32>
    %27 = arith.addf %25, %26 : vector<32x1xf32>
    %28 = math.rsqrt %27 : vector<32x1xf32>
    %29 = vector.broadcast %19 : vector<32x1xf32> to vector<32x64xf32>
    %30 = arith.subf %2, %29 : vector<32x64xf32>
    %31 = vector.broadcast %28 : vector<32x1xf32> to vector<32x64xf32>
    %32 = arith.mulf %30, %31 : vector<32x64xf32>
    %33 = vector.broadcast %19 : vector<32x1xf32> to vector<32x64xf32>
    %34 = arith.subf %5, %33 : vector<32x64xf32>
    %35 = vector.broadcast %28 : vector<32x1xf32> to vector<32x64xf32>
    %36 = arith.mulf %34, %35 : vector<32x64xf32>
    %c0_13 = arith.constant 0 : index
    %c0_14 = arith.constant 0 : index
    %37 = vector.load %arg2[%c0_13, %c0_14] : memref<64x64xf32, #tpu.memory_space<vmem>>, vector<64x64xf32>
    %cst_15 = arith.constant dense<0.000000e+00> : vector<32x64xf32>
    %38 = tpu.matmul %32, %37, %cst_15 {dimension_numbers = #tpu.dot_dimension_numbers<[1], [0], [0], [1], [0, 0, 1, 1], [], []>} : vector<32x64xf32>, vector<64x64xf32>, vector<32x64xf32> -> vector<32x64xf32>
    %c0_16 = arith.constant 0 : index
    %c0_17 = arith.constant 0 : index
    %39 = vector.load %arg3[%c0_16, %c0_17] : memref<64x64xf32, #tpu.memory_space<vmem>>, vector<64x64xf32>
    %cst_18 = arith.constant dense<0.000000e+00> : vector<32x64xf32>
    %40 = tpu.matmul %36, %39, %cst_18 {dimension_numbers = #tpu.dot_dimension_numbers<[1], [0], [0], [1], [0, 0, 1, 1], [], []>} : vector<32x64xf32>, vector<64x64xf32>, vector<32x64xf32> -> vector<32x64xf32>
    %41 = arith.addf %38, %40 : vector<32x64xf32>
    %c0_19 = arith.constant 0 : index
    %c0_20 = arith.constant 0 : index
    %42 = vector.load %arg4[%c0_19, %c0_20] : memref<1x64xf32, #tpu.memory_space<vmem>>, vector<1x64xf32>
    %43 = vector.broadcast %42 : vector<1x64xf32> to vector<32x64xf32>
    %44 = arith.addf %41, %43 : vector<32x64xf32>
    %c0_21 = arith.constant 0 : index
    %c0_22 = arith.constant 0 : index
    %45 = vector.load %arg5[%c0_21, %c0_22] : memref<32x64xf32, #tpu.memory_space<vmem>>, vector<32x64xf32>
    tpu.vector_store %arg5[%c0_21, %c0_22], %44 {strides = array<i32>} : memref<32x64xf32, #tpu.memory_space<vmem>>, vector<32x64xf32>,
    return
  }
  func.func @transform_0(%arg0: i32) -> (i32, i32, i32, i32) {
    %c0_i32 = arith.constant 0 : i32
    %c0_i32_0 = arith.constant 0 : i32
    %c0_i32_1 = arith.constant 0 : i32
    %c0_i32_2 = arith.constant 0 : i32
    return %arg0, %c0_i32, %c0_i32_0, %c0_i32_1 : i32, i32, i32, i32
  }
  func.func @transform_1(%arg0: i32) -> (i32, i32) {
    %c0_i32 = arith.constant 0 : i32
    %c0_i32_0 = arith.constant 0 : i32
    %c0_i32_1 = arith.constant 0 : i32
    return %c0_i32, %c0_i32_0 : i32, i32
  }
  func.func @transform_2(%arg0: i32) -> (i32, i32) {
    %c0_i32 = arith.constant 0 : i32
    %c0_i32_0 = arith.constant 0 : i32
    %c0_i32_1 = arith.constant 0 : i32
    return %c0_i32, %c0_i32_0 : i32, i32
  }
  func.func @transform_3(%arg0: i32) -> (i32, i32) {
    %c0_i32 = arith.constant 0 : i32
    %c0_i32_0 = arith.constant 0 : i32
    %c0_i32_1 = arith.constant 0 : i32
    return %c0_i32, %c0_i32_0 : i32, i32
  }
  func.func @transform_4(%arg0: i32) -> (i32, i32) {
    %c0_i32 = arith.constant 0 : i32
    %c0_i32_0 = arith.constant 0 : i32
    return %arg0, %c0_i32 : i32, i32
  }
}

</mosaic_0001>

<llo_original>
// kernel: tpu_custom_call.1
$region0: #{tpu_custom_call.1}
  #allocation0 [shape = 'u32[]', space=smem, size = 0x4, offset = 0x4, fixed_abs, tag = 'smem constant byte address 0x4 - core index']
  #allocation1 [shape = 'u32[144,128]{1,0:T(1,128)}', space=vmem, size = 0x12000, scoped, tag = 'internal scratch']
  %s0 = inlined_call_operand.hbm [shape: f32[16,2,8,64], index: 0, kind: input, shape index: {}]
  %s1 = inlined_call_operand.hbm [shape: f32[64,64], index: 1, kind: input, shape index: {}]
  %s2 = inlined_call_operand.hbm [shape: f32[64,64], index: 2, kind: input, shape index: {}]
  %s3 = inlined_call_operand.vmem [shape: f32[1,64], index: 3, kind: input, shape index: {}]
  %s4 = inlined_call_operand.vmem [shape: f32[128,64], index: 4, kind: output, shape index: {}]
  %s5 = sld [smem:[#allocation0]]
  $region61: #{tpu_custom_call.1} parent=0
    _
  %s7 = ssub.s32 1, %s5
  %s8 = scalar_select 0, %s7, %s5
  $region1: #{tpu_custom_call.1} parent=0
    #allocation2 [shape = 'u8[65536]{0}', space=vmem, size = 0x10000, scoped, tag = 'input window, operand 0']
    #allocation3 [shape = 's32[2]{0}', space=sflag, size = 0x8, scoped, tag = 'scoped memory for tpu_custom_call.1']
    #allocation4 [shape = 'u8[32768]{0}', space=vmem, size = 0x8000, scoped, tag = 'input window, operand 1, single buffered']
    #allocation5 [shape = 's32[1]{0}', space=sflag, size = 0x4, scoped, tag = 'scoped memory for tpu_custom_call.1']
    #allocation6 [shape = 'u8[32768]{0}', space=vmem, size = 0x8000, scoped, tag = 'input window, operand 2, single buffered']
    %9 = vsyncpa [#allocation3], 0
    %s10 = scalar_lea.sflag [#allocation3], 1
    %11 = vsyncpa %s10, 0
    %12 = vsyncpa [#allocation5], 0
    loop: start=0, step=1, limit=6
    $region2: #{tpu_custom_call.1} parent=1 // loop_pre_header
      _
    $region3: #{tpu_custom_call.1} parent=1 // loop_header
      %s14 = sphi 0, %s18
      %p15 = scmp.ge.s32.totalorder %s14, 6
      %s24 = sphi 0, %s26
      %s27 = sphi 0, %s24
      %s28 = sphi 0, %s27
      %s44 = sphi 0, %s28
      %s48 = sphi 0, %s48
      %s50 = sphi 0, %s48
      %s51 = sphi 0, %s50
      %s65 = sphi 0, %s51
      %s69 = sphi 0, %s69
      %s71 = sphi 0, %s69
      %s72 = sphi 0, %s71
      %s86 = sphi 0, %s72
      %s90 = sphi 0, %s90
      %s92 = sphi 0, %s90
      %s93 = sphi 0, %s92
      %s107 = sphi 0, %s93
      %s113 = sphi 0, %s115
      %s116 = sphi 0, %s113
      %s117 = sphi 0, %s116
      %s133 = sphi 0, %s117
    $region4: #{tpu_custom_call.1} parent=1 // loop_header_branch
      %17 = sbr.rel (%p15) target = $region8
    $region5: #{tpu_custom_call.1} parent=1 // loop_body
      %s19 = ssub.s32 %s14, 1
      %s20 = ssub.s32 %s14, 2
      %s21 = sadd.s32 %s14, 1
      %s22 = ssub.s32 %s14, %s21
      %p23 = scmp.eq.s32.totalorder %s22, 0
      %s25 = sadd.s32 %s24, 1
      %s26 = scalar_select %p23, %s24, %s25
      %p29 = pneg %p23
      %p30 = scmp.eq.s32.totalorder %s14, 3
      %p31 = por %p29, %p30
      %p32 = scmp.ne.s32.totalorder %s24, %s27
      %p33 = scmp.eq.s32.totalorder %s14, 0
      %p34 = por %p32, %p33
      %p35 = scmp.ne.s32.totalorder %s24, %s27
      %p36 = scmp.eq.s32.totalorder %s19, 3
      %p37 = por %p35, %p36
      %p38 = scmp.ne.s32.totalorder %s27, %s28
      %p39 = scmp.eq.s32.totalorder %s19, 0
      %p40 = por %p38, %p39
      %p41 = scmp.ne.s32.totalorder %s27, %s28
      %p42 = scmp.eq.s32.totalorder %s20, 3
      %p43 = por %p41, %p42
      %p45 = scmp.ne.s32.totalorder %s28, %s44
      %p46 = scmp.eq.s32.totalorder %s20, 0
      %p47 = por %p45, %p46
      %s49 = sadd.s32 %s48, 1
      %p52 = scmp.eq.s32.totalorder %s14, 3
      %p53 = scmp.ne.s32.totalorder %s48, %s50
      %p54 = scmp.eq.s32.totalorder %s14, 0
      %p55 = por %p53, %p54
      %p56 = scmp.ne.s32.totalorder %s48, %s50
      %p57 = scmp.eq.s32.totalorder %s19, 3
      %p58 = por %p56, %p57
      %p59 = scmp.ne.s32.totalorder %s50, %s51
      %p60 = scmp.eq.s32.totalorder %s19, 0
      %p61 = por %p59, %p60
      %p62 = scmp.ne.s32.totalorder %s50, %s51
      %p63 = scmp.eq.s32.totalorder %s20, 3
      %p64 = por %p62, %p63
      %p66 = scmp.ne.s32.totalorder %s51, %s65
      %p67 = scmp.eq.s32.totalorder %s20, 0
      %p68 = por %p66, %p67
      %s70 = sadd.s32 %s69, 1
      %p73 = scmp.eq.s32.totalorder %s14, 3
      %p74 = scmp.ne.s32.totalorder %s69, %s71
      %p75 = scmp.eq.s32.totalorder %s14, 0
      %p76 = por %p74, %p75
      %p77 = scmp.ne.s32.totalorder %s69, %s71
      %p78 = scmp.eq.s32.totalorder %s19, 3
      %p79 = por %p77, %p78
      %p80 = scmp.ne.s32.totalorder %s71, %s72
      %p81 = scmp.eq.s32.totalorder %s19, 0
      %p82 = por %p80, %p81
      %p83 = scmp.ne.s32.totalorder %s71, %s72
      %p84 = scmp.eq.s32.totalorder %s20, 3
      %p85 = por %p83, %p84
      %p87 = scmp.ne.s32.totalorder %s72, %s86
      %p88 = scmp.eq.s32.totalorder %s20, 0
      %p89 = por %p87, %p88
      %s91 = sadd.s32 %s90, 1
      %p94 = scmp.eq.s32.totalorder %s14, 3
      %p95 = scmp.ne.s32.totalorder %s90, %s92
      %p96 = scmp.eq.s32.totalorder %s14, 0
      %p97 = por %p95, %p96
      %p98 = scmp.ne.s32.totalorder %s90, %s92
      %p99 = scmp.eq.s32.totalorder %s19, 3
      %p100 = por %p98, %p99
      %p101 = scmp.ne.s32.totalorder %s92, %s93
      %p102 = scmp.eq.s32.totalorder %s19, 0
      %p103 = por %p101, %p102
      %p104 = scmp.ne.s32.totalorder %s92, %s93
      %p105 = scmp.eq.s32.totalorder %s20, 3
      %p106 = por %p104, %p105
      %p108 = scmp.ne.s32.totalorder %s93, %s107
      %p109 = scmp.eq.s32.totalorder %s20, 0
      %p110 = por %p108, %p109
      %s111 = ssub.s32 %s14, %s21
      %p112 = scmp.eq.s32.totalorder %s111, 0
      %s114 = sadd.s32 %s113, 1
      %s115 = scalar_select %p112, %s113, %s114
      %p118 = pneg %p112
      %p119 = scmp.eq.s32.totalorder %s14, 3
      %p120 = por %p118, %p119
      %p121 = scmp.ne.s32.totalorder %s113, %s116
      %p122 = scmp.eq.s32.totalorder %s14, 0
      %p123 = por %p121, %p122
      %p124 = scmp.ne.s32.totalorder %s113, %s116
      %p125 = scmp.eq.s32.totalorder %s19, 3
      %p126 = por %p124, %p125
      %p127 = scmp.ne.s32.totalorder %s116, %s117
      %p128 = scmp.eq.s32.totalorder %s19, 0
      %p129 = por %p127, %p128
      %p130 = scmp.ne.s32.totalorder %s116, %s117
      %p131 = scmp.eq.s32.totalorder %s20, 3
      %p132 = por %p130, %p131
      %p134 = scmp.ne.s32.totalorder %s117, %s133
      %p135 = scmp.eq.s32.totalorder %s20, 0
      %p136 = por %p134, %p135
      %p137 = scmp.le.s32.totalorder 1, %s14
      %p138 = scmp.lt.s32.totalorder %s14, 5
      %p139 = pnand %p137, %p138
      %p140 = pneg %p139
      // Predicated region
      $region9: #{tpu_custom_call.1} parent=5 // pred_check
        _
      $region10: #{tpu_custom_call.1} parent=5 // pred_check_branch
        %142 = sbr.rel (%p139) target = $region12
      $region11: #{tpu_custom_call.1} parent=5 // pred_region
        %s143 = ssub.s32 %s14, 1
        // Predicated region
        $region13: #{tpu_custom_call.1} parent=11 // pred_check
          %p144 = pneg %p61
        $region14: #{tpu_custom_call.1} parent=11 // pred_check_branch
          %146 = sbr.rel (%p144) target = $region16
        $region15: #{tpu_custom_call.1} parent=11 // pred_region
          %s148 = ssub.s32 1024, 1024
          %149 = vsyncadd [#allocation5], %s148
          %s150 = sshll.u32 [#allocation4], 4
          %s151 = int_to_ptr.vmem [resolvable:$true] %s150
          %156 = dma.hbm_to_vmem [thread:$0]  %s1, 1024, %s151, [#allocation5], 128, 128, 8
        $region16: #{tpu_custom_call.1} parent=11 // pred_fallthru
          _
        // Predicated region
        $region17: #{tpu_custom_call.1} parent=11 // pred_check
          %p157 = pneg %p82
        $region18: #{tpu_custom_call.1} parent=11 // pred_check_branch
          %159 = sbr.rel (%p157) target = $region20
        $region19: #{tpu_custom_call.1} parent=11 // pred_region
          %s161 = ssub.s32 1024, 1024
          %162 = vsyncadd [#allocation5], %s161
          %s163 = sshll.u32 [#allocation6], 4
          %s164 = int_to_ptr.vmem [resolvable:$true] %s163
          %169 = dma.hbm_to_vmem [thread:$0]  %s2, 1024, %s164, [#allocation5], 128, 128, 8
        $region20: #{tpu_custom_call.1} parent=11 // pred_fallthru
          _
        // Predicated region
        $region21: #{tpu_custom_call.1} parent=11 // pred_check
          %p170 = pneg %p103
        $region22: #{tpu_custom_call.1} parent=11 // pred_check_branch
          %172 = sbr.rel (%p170) target = $region24
        $region23: #{tpu_custom_call.1} parent=11 // pred_region
          _
        $region24: #{tpu_custom_call.1} parent=11 // pred_fallthru
          _
      $region12: #{tpu_custom_call.1} parent=5 // pred_fallthru
        _
      %p173 = scmp.lt.s32.totalorder %s14, 4
      // Predicated region
      $region25: #{tpu_custom_call.1} parent=5 // pred_check
        %p174 = pneg %p173
      $region26: #{tpu_custom_call.1} parent=5 // pred_check_branch
        %176 = sbr.rel (%p174) target = $region28
      $region27: #{tpu_custom_call.1} parent=5 // pred_region
        // Predicated region
        $region29: #{tpu_custom_call.1} parent=27 // pred_check
          %p177 = pneg %p34
        $region30: #{tpu_custom_call.1} parent=27 // pred_check_branch
          %179 = sbr.rel (%p177) target = $region32
        $region31: #{tpu_custom_call.1} parent=27 // pred_region
          %s180 = sand.u32 %s24, 1
          %s181 = scalar_lea.sflag [#allocation3], %s180
          %s182 = sand.u32 %s24, 1
          %s183 = smul.addr %s182, 64
          %s184 = scalar_lea.vmem [#allocation2], %s183
          %s185 = smul.u32 4, %s14
          %s187 = ssub.s32 1024, 1024
          %188 = vsyncadd %s181, %s187
          %s189 = smul.addr %s185, 2
          %s190 = smul.addr %s189, 128
          %s191 = scalar_lea.hbm %s0, %s190
          %s192 = sshll.u32 %s184, 4
          %s193 = int_to_ptr.vmem [resolvable:$true] %s192
          %198 = dma.hbm_to_vmem [thread:$0]  %s191, 1024, %s193, %s181, 128, 128, 8
        $region32: #{tpu_custom_call.1} parent=27 // pred_fallthru
          _
      $region28: #{tpu_custom_call.1} parent=5 // pred_fallthru
        _
      %p199 = scmp.le.s32.totalorder 1, %s14
      %p200 = scmp.lt.s32.totalorder %s14, 5
      %p201 = pnand %p199, %p200
      %p202 = pneg %p201
      // Predicated region
      $region33: #{tpu_custom_call.1} parent=5 // pred_check
        _
      $region34: #{tpu_custom_call.1} parent=5 // pred_check_branch
        %204 = sbr.rel (%p201) target = $region36
      $region35: #{tpu_custom_call.1} parent=5 // pred_region
        %s205 = ssub.s32 %s14, 1
        %s206 = sand.u32 %s27, 1
        %s207 = scalar_lea.sflag [#allocation3], %s206
        %s208 = sand.u32 %s27, 1
        %s209 = smul.addr %s208, 64
        %s210 = scalar_lea.vmem [#allocation2], %s209
        // Predicated region
        $region37: #{tpu_custom_call.1} parent=35 // pred_check
          %p211 = pneg %p40
        $region38: #{tpu_custom_call.1} parent=35 // pred_check_branch
          %213 = sbr.rel (%p211) target = $region40
        $region39: #{tpu_custom_call.1} parent=35 // pred_region
          %214 = dma.done %s207, 1024
        $region40: #{tpu_custom_call.1} parent=35 // pred_fallthru
          _
        // Predicated region
        $region41: #{tpu_custom_call.1} parent=35 // pred_check
          %p215 = pneg %p61
        $region42: #{tpu_custom_call.1} parent=35 // pred_check_branch
          %217 = sbr.rel (%p215) target = $region44
        $region43: #{tpu_custom_call.1} parent=35 // pred_region
          %218 = dma.done [#allocation5], 1024
        $region44: #{tpu_custom_call.1} parent=35 // pred_fallthru
          _
        // Predicated region
        $region45: #{tpu_custom_call.1} parent=35 // pred_check
          %p219 = pneg %p82
        $region46: #{tpu_custom_call.1} parent=35 // pred_check_branch
          %221 = sbr.rel (%p219) target = $region48
        $region47: #{tpu_custom_call.1} parent=35 // pred_region
          %222 = dma.done [#allocation5], 1024
        $region48: #{tpu_custom_call.1} parent=35 // pred_fallthru
          _
        %s223 = sand.u32 %s27, 1
        %s224 = scalar_lea.sflag [#allocation3], %s223
        %s225 = sand.u32 %s27, 1
        %s226 = smul.addr %s225, 64
        %s227 = scalar_lea.vmem [#allocation2], %s226
        %p228 = pneg %p40
        %p229 = pneg %p37
        %p230 = pneg %p61
        %p231 = pneg %p58
        %p232 = pneg %p82
        %p233 = pneg %p79
        %p234 = pneg %p103
        %p235 = pneg %p100
        %p236 = pneg %p129
        %p237 = pneg %p126
        %s238 = smul.u32 4, %s19
        %p239 = scmp.lt.s32.totalorder %s238, 15
        %s240 = scalar_select %p239, %s238, 15
        %s241 = smul.addr %s240, 8
        %s242 = scalar_lea.vmem %s4, %s241
        %s243 = smul.u32 4, %s19
        %s244 = smul.u32 4, %s19
        %p245 = scmp.lt.s32.totalorder %s244, 15
        %s246 = scalar_select %p245, %s244, 15
        %s247 = smul.addr %s246, 8
        %s248 = scalar_lea.vmem %s4, %s247
        %s249 = smul.u32 4, %s19
        %v250 = vld [vmem:[%s210] sm:$0xff]
        %v251 = vld [vmem:[%s210 + $0x10] sm:$0xff]
        %v252 = vld [vmem:[%s210 + $0x20] sm:$0xff]
        %v253 = vld [vmem:[%s210 + $0x30] sm:$0xff]
        %s254 = scalar_lea.vmem %s210, 8 [#allocation2]
        %v255 = vld [vmem:[%s254] sm:$0xff]
        %v256 = vld [vmem:[%s254 + $0x10] sm:$0xff]
        %v257 = vld [vmem:[%s254 + $0x20] sm:$0xff]
        %v258 = vld [vmem:[%s254 + $0x30] sm:$0xff]
        %vm259 = vcmask 523264
        %v260 = vsel %vm259, %v250, 0.0
        %261 = vadd.xlane.f32.xlu0 %v260
        %v262 = vpop.xlane.xlu0 %261
        %v263 = vsel %vm259, %v251, 0.0
        %264 = vadd.xlane.f32.xlu0 %v263
        %v265 = vpop.xlane.xlu0 %264
        %v266 = vsel %vm259, %v252, 0.0
        %267 = vadd.xlane.f32.xlu0 %v266
        %v268 = vpop.xlane.xlu0 %267
        %v269 = vsel %vm259, %v253, 0.0
        %270 = vadd.xlane.f32.xlu0 %v269
        %v271 = vpop.xlane.xlu0 %270
        %v272 = vsel %vm259, %v255, 0.0
        %273 = vadd.xlane.f32.xlu0 %v272
        %v274 = vpop.xlane.xlu0 %273
        %v275 = vsel %vm259, %v256, 0.0
        %276 = vadd.xlane.f32.xlu0 %v275
        %v277 = vpop.xlane.xlu0 %276
        %v278 = vsel %vm259, %v257, 0.0
        %279 = vadd.xlane.f32.xlu0 %v278
        %v280 = vpop.xlane.xlu0 %279
        %v281 = vsel %vm259, %v258, 0.0
        %282 = vadd.xlane.f32.xlu0 %v281
        %v283 = vpop.xlane.xlu0 %282
        %v284 = vadd.f32 %v262, %v274
        %v285 = vadd.f32 %v265, %v277
        %v286 = vadd.f32 %v268, %v280
        %v287 = vadd.f32 %v271, %v283
        %v288 = vmul.f32 %v250, %v250
        %v289 = vmul.f32 %v251, %v251
        %v290 = vmul.f32 %v252, %v252
        %v291 = vmul.f32 %v253, %v253
        %v292 = vsel %vm259, %v288, 0.0
        %293 = vadd.xlane.f32.xlu0 %v292
        %v294 = vpop.xlane.xlu0 %293
        %v295 = vsel %vm259, %v289, 0.0
        %296 = vadd.xlane.f32.xlu0 %v295
        %v297 = vpop.xlane.xlu0 %296
        %v298 = vsel %vm259, %v290, 0.0
        %299 = vadd.xlane.f32.xlu0 %v298
        %v300 = vpop.xlane.xlu0 %299
        %v301 = vsel %vm259, %v291, 0.0
        %302 = vadd.xlane.f32.xlu0 %v301
        %v303 = vpop.xlane.xlu0 %302
        %v304 = vmul.f32 %v255, %v255
        %v305 = vmul.f32 %v256, %v256
        %v306 = vmul.f32 %v257, %v257
        %v307 = vmul.f32 %v258, %v258
        %v308 = vsel %vm259, %v304, 0.0
        %309 = vadd.xlane.f32.xlu0 %v308
        %v310 = vpop.xlane.xlu0 %309
        %v311 = vsel %vm259, %v305, 0.0
        %312 = vadd.xlane.f32.xlu0 %v311
        %v313 = vpop.xlane.xlu0 %312
        %v314 = vsel %vm259, %v306, 0.0
        %315 = vadd.xlane.f32.xlu0 %v314
        %v316 = vpop.xlane.xlu0 %315
        %v317 = vsel %vm259, %v307, 0.0
        %318 = vadd.xlane.f32.xlu0 %v317
        %v319 = vpop.xlane.xlu0 %318
        %v320 = vadd.f32 %v294, %v310
        %v321 = vadd.f32 %v297, %v313
        %v322 = vadd.f32 %v300, %v316
        %v323 = vadd.f32 %v303, %v319
        %v324 = vmul.f32 %v284, 0.0078125
        %v325 = vmul.f32 %v285, 0.0078125
        %v326 = vmul.f32 %v286, 0.0078125
        %v327 = vmul.f32 %v287, 0.0078125
        %v328 = vmul.f32 %v320, 0.0078125
        %v329 = vmul.f32 %v321, 0.0078125
        %v330 = vmul.f32 %v322, 0.0078125
        %v331 = vmul.f32 %v323, 0.0078125
        %v332 = vmul.f32 %v324, %v324
        %v333 = vmul.f32 %v325, %v325
        %v334 = vmul.f32 %v326, %v326
        %v335 = vmul.f32 %v327, %v327
        %v336 = vsub.f32 %v328, %v332
        %v337 = vsub.f32 %v329, %v333
        %v338 = vsub.f32 %v330, %v334
        %v339 = vsub.f32 %v331, %v335
        %v340 = vmax.f32 %v336, 0.0
        %v341 = vmax.f32 %v337, 0.0
        %v342 = vmax.f32 %v338, 0.0
        %v343 = vmax.f32 %v339, 0.0
        %v344 = vadd.f32 %v340, 1e-05
        %v345 = vadd.f32 %v341, 1e-05
        %v346 = vadd.f32 %v342, 1e-05
        %v347 = vadd.f32 %v343, 1e-05
        %v348 = vrsqrt.pop %v344
        %v349 = vrsqrt.pop %v345
        %v350 = vrsqrt.pop %v346
        %v351 = vrsqrt.pop %v347
        %v352 = vsub.f32 %v250, %v324
        %v353 = vsub.f32 %v251, %v325
        %v354 = vsub.f32 %v252, %v326
        %v355 = vsub.f32 %v253, %v327
        %v356 = vmul.f32 %v352, %v348
        %v357 = vmul.f32 %v353, %v349
        %v358 = vmul.f32 %v354, %v350
        %v359 = vmul.f32 %v355, %v351
        %v360 = vsub.f32 %v255, %v324
        %v361 = vsub.f32 %v256, %v325
        %v362 = vsub.f32 %v257, %v326
        %v363 = vsub.f32 %v258, %v327
        %v364 = vmul.f32 %v360, %v348
        %v365 = vmul.f32 %v361, %v349
        %v366 = vmul.f32 %v362, %v350
        %v367 = vmul.f32 %v363, %v351
        %v368 = vld [vmem:[#allocation4] sm:$0xff]
        %v369 = vld [vmem:[#allocation4 + $0x8] sm:$0xff]
        %v370 = vld [vmem:[#allocation4 + $0x10] sm:$0xff]
        %v371 = vld [vmem:[#allocation4 + $0x18] sm:$0xff]
        %v372 = vld [vmem:[#allocation4 + $0x20] sm:$0xff]
        %v373 = vld [vmem:[#allocation4 + $0x28] sm:$0xff]
        %v374 = vld [vmem:[#allocation4 + $0x30] sm:$0xff]
        %v375 = vld [vmem:[#allocation4 + $0x38] sm:$0xff]
        %v376 = vld [vmem:[#allocation6] sm:$0xff]
        %v377 = vld [vmem:[#allocation6 + $0x8] sm:$0xff]
        %v378 = vld [vmem:[#allocation6 + $0x10] sm:$0xff]
        %v379 = vld [vmem:[#allocation6 + $0x18] sm:$0xff]
        %v380 = vld [vmem:[#allocation6 + $0x20] sm:$0xff]
        %v381 = vld [vmem:[#allocation6 + $0x28] sm:$0xff]
        %v382 = vld [vmem:[#allocation6 + $0x30] sm:$0xff]
        %v383 = vld [vmem:[#allocation6 + $0x38] sm:$0xff]
        %v385 = vsel %vm259, %v364, 0
        %v388 = vsel %vm259, %v365, 0
        %v391 = vsel %vm259, %v366, 0
        %v394 = vsel %vm259, %v367, 0
        %396 = vmatprep.subr.mxu0 0.0
        %397 = vmatpush1.msra.mxu0 0.0
        %398 = vmatprep.subr.mxu0 0.0
        %399 = vmatpush1.msra.mxu0 0.0
        %400 = vmatprep.subr.mxu0 0.0
        %401 = vmatpush1.msra.mxu0 0.0
        %402 = vmatprep.subr.mxu0 0.0
        %403 = vmatpush1.msra.mxu0 0.0
        %404 = vmatprep.subr.mxu0 0.0
        %405 = vmatpush1.msra.mxu0 0.0
        %406 = vmatprep.subr.mxu0 0.0
        %407 = vmatpush1.msra.mxu0 0.0
        %408 = vmatprep.subr.mxu0 0.0
        %409 = vmatpush1.msra.mxu0 0.0
        %410 = vmatprep.subr.mxu0 0.0
        %411 = vmatpush1.msra.mxu0 0.0
        %412 = vmatprep.subr.mxu0 0.0
        %413 = vmatpush1.msra.mxu0 %v383
        %414 = vmatprep.subr.mxu0 0.0
        %415 = vmatpush1.msra.mxu0 %v382
        %416 = vmatprep.subr.mxu0 0.0
        %417 = vmatpush1.msra.mxu0 %v381
        %418 = vmatprep.subr.mxu0 0.0
        %419 = vmatpush1.msra.mxu0 %v380
        %420 = vmatprep.subr.mxu0 0.0
        %421 = vmatpush1.msra.mxu0 %v379
        %422 = vmatprep.subr.mxu0 0.0
        %423 = vmatpush1.msra.mxu0 %v378
        %424 = vmatprep.subr.mxu0 0.0
        %425 = vmatpush1.msra.mxu0 %v377
        %426 = vmatprep.subr.mxu0 0.0
        %427 = vmatpush1.msra.mxu0 %v376
        %428 = vmatprep.subr.mxu0 0.0
        %429 = vmatpush2.msra.mxu0 0.0
        %430 = vmatprep.subr.mxu0 0.0
        %431 = vmatpush2.msra.mxu0 0.0
        %432 = vmatprep.subr.mxu0 0.0
        %433 = vmatpush2.msra.mxu0 0.0
        %434 = vmatprep.subr.mxu0 0.0
        %435 = vmatpush2.msra.mxu0 0.0
        %436 = vmatprep.subr.mxu0 0.0
        %437 = vmatpush2.msra.mxu0 0.0
        %438 = vmatprep.subr.mxu0 0.0
        %439 = vmatpush2.msra.mxu0 0.0
        %440 = vmatprep.subr.mxu0 0.0
        %441 = vmatpush2.msra.mxu0 0.0
        %442 = vmatprep.subr.mxu0 0.0
        %443 = vmatpush2.msra.mxu0 0.0
        %444 = vmatprep.subr.mxu0 0.0
        %445 = vmatpush2.msra.mxu0 0.0
        %446 = vmatprep.subr.mxu0 0.0
        %447 = vmatpush2.msra.mxu0 0.0
        %448 = vmatprep.subr.mxu0 0.0
        %449 = vmatpush2.msra.mxu0 0.0
        %450 = vmatprep.subr.mxu0 0.0
        %451 = vmatpush2.msra.mxu0 0.0
        %452 = vmatprep.subr.mxu0 0.0
        %453 = vmatpush2.msra.mxu0 0.0
        %454 = vmatprep.subr.mxu0 0.0
        %455 = vmatpush2.msra.mxu0 0.0
        %456 = vmatprep.subr.mxu0 0.0
        %457 = vmatpush2.msra.mxu0 0.0
        %458 = vmatprep.subr.mxu0 0.0
        %459 = vmatpush2.msra.mxu0 0.0
        %460 = vmatprep.mubr.f32.mxu0 0.0
        %461 = vmatmul.mubr.f32.gmra.mxu0 %v385
        %v462 = vpop.f32.mrf.mxu0
        %v463 = vadd.f32 0.0, %v462
        %v464 = vpop.f32.mrf.mxu0
        %465 = vmatprep.mubr.f32.mxu0 0.0
        %466 = vmatmul.mubr.f32.gmra.mxu0 %v388
        %v467 = vpop.f32.mrf.mxu0
        %v468 = vadd.f32 0.0, %v467
        %v469 = vpop.f32.mrf.mxu0
        %470 = vmatprep.mubr.f32.mxu0 0.0
        %471 = vmatmul.mubr.f32.gmra.mxu0 %v391
        %v472 = vpop.f32.mrf.mxu0
        %v473 = vadd.f32 0.0, %v472
        %v474 = vpop.f32.mrf.mxu0
        %475 = vmatprep.mubr.f32.mxu0 0.0
        %476 = vmatmul.mubr.f32.gmra.mxu0 %v394
        %v477 = vpop.f32.mrf.mxu0
        %v478 = vadd.f32 0.0, %v477
        %v479 = vpop.f32.mrf.mxu0
        %480 = vdwg.mxu0
        %v482 = vsel %vm259, %v356, 0
        %v485 = vsel %vm259, %v357, 0
        %v488 = vsel %vm259, %v358, 0
        %v491 = vsel %vm259, %v359, 0
        %493 = vmatprep.subr.mxu0 0.0
        %494 = vmatpush1.msra.mxu0 0.0
        %495 = vmatprep.subr.mxu0 0.0
        %496 = vmatpush1.msra.mxu0 0.0
        %497 = vmatprep.subr.mxu0 0.0
        %498 = vmatpush1.msra.mxu0 0.0
        %499 = vmatprep.subr.mxu0 0.0
        %500 = vmatpush1.msra.mxu0 0.0
        %501 = vmatprep.subr.mxu0 0.0
        %502 = vmatpush1.msra.mxu0 0.0
        %503 = vmatprep.subr.mxu0 0.0
        %504 = vmatpush1.msra.mxu0 0.0
        %505 = vmatprep.subr.mxu0 0.0
        %506 = vmatpush1.msra.mxu0 0.0
        %507 = vmatprep.subr.mxu0 0.0
        %508 = vmatpush1.msra.mxu0 0.0
        %509 = vmatprep.subr.mxu0 0.0
        %510 = vmatpush1.msra.mxu0 %v375
        %511 = vmatprep.subr.mxu0 0.0
        %512 = vmatpush1.msra.mxu0 %v374
        %513 = vmatprep.subr.mxu0 0.0
        %514 = vmatpush1.msra.mxu0 %v373
        %515 = vmatprep.subr.mxu0 0.0
        %516 = vmatpush1.msra.mxu0 %v372
        %517 = vmatprep.subr.mxu0 0.0
        %518 = vmatpush1.msra.mxu0 %v371
        %519 = vmatprep.subr.mxu0 0.0
        %520 = vmatpush1.msra.mxu0 %v370
        %521 = vmatprep.subr.mxu0 0.0
        %522 = vmatpush1.msra.mxu0 %v369
        %523 = vmatprep.subr.mxu0 0.0
        %524 = vmatpush1.msra.mxu0 %v368
        %525 = vmatprep.subr.mxu0 0.0
        %526 = vmatpush2.msra.mxu0 0.0
        %527 = vmatprep.subr.mxu0 0.0
        %528 = vmatpush2.msra.mxu0 0.0
        %529 = vmatprep.subr.mxu0 0.0
        %530 = vmatpush2.msra.mxu0 0.0
        %531 = vmatprep.subr.mxu0 0.0
        %532 = vmatpush2.msra.mxu0 0.0
        %533 = vmatprep.subr.mxu0 0.0
        %534 = vmatpush2.msra.mxu0 0.0
        %535 = vmatprep.subr.mxu0 0.0
        %536 = vmatpush2.msra.mxu0 0.0
        %537 = vmatprep.subr.mxu0 0.0
        %538 = vmatpush2.msra.mxu0 0.0
        %539 = vmatprep.subr.mxu0 0.0
        %540 = vmatpush2.msra.mxu0 0.0
        %541 = vmatprep.subr.mxu0 0.0
        %542 = vmatpush2.msra.mxu0 0.0
        %543 = vmatprep.subr.mxu0 0.0
        %544 = vmatpush2.msra.mxu0 0.0
        %545 = vmatprep.subr.mxu0 0.0
        %546 = vmatpush2.msra.mxu0 0.0
        %547 = vmatprep.subr.mxu0 0.0
        %548 = vmatpush2.msra.mxu0 0.0
        %549 = vmatprep.subr.mxu0 0.0
        %550 = vmatpush2.msra.mxu0 0.0
        %551 = vmatprep.subr.mxu0 0.0
        %552 = vmatpush2.msra.mxu0 0.0
        %553 = vmatprep.subr.mxu0 0.0
        %554 = vmatpush2.msra.mxu0 0.0
        %555 = vmatprep.subr.mxu0 0.0
        %556 = vmatpush2.msra.mxu0 0.0
        %557 = vmatprep.mubr.f32.mxu0 0.0
        %558 = vmatmul.mubr.f32.gmra.mxu0 %v482
        %v559 = vpop.f32.mrf.mxu0
        %v560 = vadd.f32 %v463, %v559
        %v561 = vpop.f32.mrf.mxu0
        %562 = vmatprep.mubr.f32.mxu0 0.0
        %563 = vmatmul.mubr.f32.gmra.mxu0 %v485
        %v564 = vpop.f32.mrf.mxu0
        %v565 = vadd.f32 %v468, %v564
        %v566 = vpop.f32.mrf.mxu0
        %567 = vmatprep.mubr.f32.mxu0 0.0
        %568 = vmatmul.mubr.f32.gmra.mxu0 %v488
        %v569 = vpop.f32.mrf.mxu0
        %v570 = vadd.f32 %v473, %v569
        %v571 = vpop.f32.mrf.mxu0
        %572 = vmatprep.mubr.f32.mxu0 0.0
        %573 = vmatmul.mubr.f32.gmra.mxu0 %v491
        %v574 = vpop.f32.mrf.mxu0
        %v575 = vadd.f32 %v478, %v574
        %v576 = vpop.f32.mrf.mxu0
        %577 = vdwg.mxu0
        %v578 = vld [vmem:[%s3] sm:$0x1]
        %v580 = vlaneseq
        %v581 = vshrl.u32 %v580, 7
        %v582 = vsub.s32 0, %v581
        %v583 = vrot.slane %v578, %v582
        %v585 = vadd.f32 %v560, %v583
        %v586 = vadd.f32 %v565, %v583
        %v587 = vadd.f32 %v570, %v583
        %v588 = vadd.f32 %v575, %v583
        %589 = vst.msk [vmem:[%s248] sm:$0xff] %vm259, %v585
        %590 = vst.msk [vmem:[%s248 + $0x8] sm:$0xff] %vm259, %v586
        %591 = vst.msk [vmem:[%s248 + $0x10] sm:$0xff] %vm259, %v587
        %592 = vst.msk [vmem:[%s248 + $0x18] sm:$0xff] %vm259, %v588
        %s593 = smul.u32 4, %s19
        %p594 = scmp.lt.s32.totalorder %s593, 15
        %s595 = scalar_select %p594, %s593, 15
        %s596 = smul.addr %s595, 8
        %s597 = scalar_lea.vmem %s4, %s596
        // Predicated region
        $region49: #{tpu_custom_call.1} parent=35 // pred_check
          %p598 = pneg %p126
        $region50: #{tpu_custom_call.1} parent=35 // pred_check_branch
          %600 = sbr.rel (%p598) target = $region52
        $region51: #{tpu_custom_call.1} parent=35 // pred_region
          %s601 = smul.u32 4, %s19
        $region52: #{tpu_custom_call.1} parent=35 // pred_fallthru
          _
      $region36: #{tpu_custom_call.1} parent=5 // pred_fallthru
        _
      %p602 = scmp.le.s32.totalorder 2, %s14
      // Predicated region
      $region53: #{tpu_custom_call.1} parent=5 // pred_check
        %p603 = pneg %p602
      $region54: #{tpu_custom_call.1} parent=5 // pred_check_branch
        %605 = sbr.rel (%p603) target = $region56
      $region55: #{tpu_custom_call.1} parent=5 // pred_region
        %s606 = ssub.s32 %s14, 2
        // Predicated region
        $region57: #{tpu_custom_call.1} parent=55 // pred_check
          %p607 = pneg %p132
        $region58: #{tpu_custom_call.1} parent=55 // pred_check_branch
          %609 = sbr.rel (%p607) target = $region60
        $region59: #{tpu_custom_call.1} parent=55 // pred_region
          %s610 = smul.u32 4, %s20
          %p611 = scmp.lt.s32.totalorder %s610, 15
          %s612 = scalar_select %p611, %s610, 15
          %s613 = smul.addr %s612, 8
          %s614 = scalar_lea.vmem %s4, %s613
        $region60: #{tpu_custom_call.1} parent=55 // pred_fallthru
          _
      $region56: #{tpu_custom_call.1} parent=5 // pred_fallthru
        _
    $region6: #{tpu_custom_call.1} parent=1 // loop_footer
      %s18 = sadd.s32 1, %s14
    $region7: #{tpu_custom_call.1} parent=1 // loop_footer_branch
      %13 = sbr.rel target = $region3
    $region8: #{tpu_custom_call.1} parent=1 // loop_exit
      _
    %615 = vsyncpa [#allocation3], 1
    %s616 = scalar_lea.sflag [#allocation3], 1
    %617 = vsyncpa %s616, 1
    %618 = vsyncpa [#allocation5], 1

// kernel: tpu_custom_call.1
$region0: #{tpu_custom_call.1}
  #allocation0 [shape = 'u32[]', space=smem, size = 0x4, offset = 0x4, fixed_abs, tag = 'smem constant byte address 0x4 - core index']
  #allocation1 [shape = 'u32[144,128]{1,0:T(1,128)}', space=vmem, size = 0x12000, scoped, tag = 'internal scratch']
  %s0 = inlined_call_operand.hbm [shape: f32[16,2,8,64], index: 0, kind: input, shape index: {}]
  %s1 = inlined_call_operand.hbm [shape: f32[64,64], index: 1, kind: input, shape index: {}]
  %s2 = inlined_call_operand.hbm [shape: f32[64,64], index: 2, kind: input, shape index: {}]
  %s3 = inlined_call_operand.vmem [shape: f32[1,64], index: 3, kind: input, shape index: {}]
  %s4 = inlined_call_operand.vmem [shape: f32[128,64], index: 4, kind: output, shape index: {}]
  %s5 = sld [smem:[#allocation0]]
  $region61: #{tpu_custom_call.1} parent=0
    _
  %s7 = ssub.s32 1, %s5
  %s8 = scalar_select 0, %s7, %s5
  $region1: #{tpu_custom_call.1} parent=0
    #allocation2 [shape = 'u8[65536]{0}', space=vmem, size = 0x10000, scoped, tag = 'input window, operand 0']
    #allocation3 [shape = 's32[2]{0}', space=sflag, size = 0x8, scoped, tag = 'scoped memory for tpu_custom_call.1']
    #allocation4 [shape = 'u8[32768]{0}', space=vmem, size = 0x8000, scoped, tag = 'input window, operand 1, single buffered']
    #allocation5 [shape = 's32[1]{0}', space=sflag, size = 0x4, scoped, tag = 'scoped memory for tpu_custom_call.1']
    #allocation6 [shape = 'u8[32768]{0}', space=vmem, size = 0x8000, scoped, tag = 'input window, operand 2, single buffered']
    %9 = vsyncpa [#allocation3], 0
    %s10 = scalar_lea.sflag [#allocation3], 1
    %11 = vsyncpa %s10, 0
    %12 = vsyncpa [#allocation5], 0
    loop: start=0, step=1, limit=6
    $region2: #{tpu_custom_call.1} parent=1 // loop_pre_header
      _
    $region3: #{tpu_custom_call.1} parent=1 // loop_header
      %s14 = sphi 0, %s18
      %p15 = scmp.ge.s32.totalorder %s14, 6
      %s24 = sphi 0, %s26
      %s27 = sphi 0, %s24
      %s28 = sphi 0, %s27
      %s44 = sphi 0, %s28
      %s48 = sphi 0, %s48
      %s50 = sphi 0, %s48
      %s51 = sphi 0, %s50
      %s65 = sphi 0, %s51
      %s69 = sphi 0, %s69
      %s71 = sphi 0, %s69
      %s72 = sphi 0, %s71
      %s86 = sphi 0, %s72
      %s90 = sphi 0, %s90
      %s92 = sphi 0, %s90
      %s93 = sphi 0, %s92
      %s107 = sphi 0, %s93
      %s113 = sphi 0, %s115
      %s116 = sphi 0, %s113
      %s117 = sphi 0, %s116
      %s133 = sphi 0, %s117
    $region4: #{tpu_custom_call.1} parent=1 // loop_header_branch
      %17 = sbr.rel (%p15) target = $region8
    $region5: #{tpu_custom_call.1} parent=1 // loop_body
      %s19 = ssub.s32 %s14, 1
      %s20 = ssub.s32 %s14, 2
      %s21 = sadd.s32 %s14, 1
      %s22 = ssub.s32 %s14, %s21
      %p23 = scmp.eq.s32.totalorder %s22, 0
      %s25 = sadd.s32 %s24, 1
      %s26 = scalar_select %p23, %s24, %s25
      %p29 = pneg %p23
      %p30 = scmp.eq.s32.totalorder %s14, 3
      %p31 = por %p29, %p30
      %p32 = scmp.ne.s32.totalorder %s24, %s27
      %p33 = scmp.eq.s32.totalorder %s14, 0
      %p34 = por %p32, %p33
      %p35 = scmp.ne.s32.totalorder %s24, %s27
      %p36 = scmp.eq.s32.totalorder %s19, 3
      %p37 = por %p35, %p36
      %p38 = scmp.ne.s32.totalorder %s27, %s28
      %p39 = scmp.eq.s32.totalorder %s19, 0
      %p40 = por %p38, %p39
      %p41 = scmp.ne.s32.totalorder %s27, %s28
      %p42 = scmp.eq.s32.totalorder %s20, 3
      %p43 = por %p41, %p42
      %p45 = scmp.ne.s32.totalorder %s28, %s44
      %p46 = scmp.eq.s32.totalorder %s20, 0
      %p47 = por %p45, %p46
      %s49 = sadd.s32 %s48, 1
      %p52 = scmp.eq.s32.totalorder %s14, 3
      %p53 = scmp.ne.s32.totalorder %s48, %s50
      %p54 = scmp.eq.s32.totalorder %s14, 0
      %p55 = por %p53, %p54
      %p56 = scmp.ne.s32.totalorder %s48, %s50
      %p57 = scmp.eq.s32.totalorder %s19, 3
      %p58 = por %p56, %p57
      %p59 = scmp.ne.s32.totalorder %s50, %s51
      %p60 = scmp.eq.s32.totalorder %s19, 0
      %p61 = por %p59, %p60
      %p62 = scmp.ne.s32.totalorder %s50, %s51
      %p63 = scmp.eq.s32.totalorder %s20, 3
      %p64 = por %p62, %p63
      %p66 = scmp.ne.s32.totalorder %s51, %s65
      %p67 = scmp.eq.s32.totalorder %s20, 0
      %p68 = por %p66, %p67
      %s70 = sadd.s32 %s69, 1
      %p73 = scmp.eq.s32.totalorder %s14, 3
      %p74 = scmp.ne.s32.totalorder %s69, %s71
      %p75 = scmp.eq.s32.totalorder %s14, 0
      %p76 = por %p74, %p75
      %p77 = scmp.ne.s32.totalorder %s69, %s71
      %p78 = scmp.eq.s32.totalorder %s19, 3
      %p79 = por %p77, %p78
      %p80 = scmp.ne.s32.totalorder %s71, %s72
      %p81 = scmp.eq.s32.totalorder %s19, 0
      %p82 = por %p80, %p81
      %p83 = scmp.ne.s32.totalorder %s71, %s72
      %p84 = scmp.eq.s32.totalorder %s20, 3
      %p85 = por %p83, %p84
      %p87 = scmp.ne.s32.totalorder %s72, %s86
      %p88 = scmp.eq.s32.totalorder %s20, 0
      %p89 = por %p87, %p88
      %s91 = sadd.s32 %s90, 1
      %p94 = scmp.eq.s32.totalorder %s14, 3
      %p95 = scmp.ne.s32.totalorder %s90, %s92
      %p96 = scmp.eq.s32.totalorder %s14, 0
      %p97 = por %p95, %p96
      %p98 = scmp.ne.s32.totalorder %s90, %s92
      %p99 = scmp.eq.s32.totalorder %s19, 3
      %p100 = por %p98, %p99
      %p101 = scmp.ne.s32.totalorder %s92, %s93
      %p102 = scmp.eq.s32.totalorder %s19, 0
      %p103 = por %p101, %p102
      %p104 = scmp.ne.s32.totalorder %s92, %s93
      %p105 = scmp.eq.s32.totalorder %s20, 3
      %p106 = por %p104, %p105
      %p108 = scmp.ne.s32.totalorder %s93, %s107
      %p109 = scmp.eq.s32.totalorder %s20, 0
      %p110 = por %p108, %p109
      %s111 = ssub.s32 %s14, %s21
      %p112 = scmp.eq.s32.totalorder %s111, 0
      %s114 = sadd.s32 %s113, 1
      %s115 = scalar_select %p112, %s113, %s114
      %p118 = pneg %p112
      %p119 = scmp.eq.s32.totalorder %s14, 3
      %p120 = por %p118, %p119
      %p121 = scmp.ne.s32.totalorder %s113, %s116
      %p122 = scmp.eq.s32.totalorder %s14, 0
      %p123 = por %p121, %p122
      %p124 = scmp.ne.s32.totalorder %s113, %s116
      %p125 = scmp.eq.s32.totalorder %s19, 3
      %p126 = por %p124, %p125
      %p127 = scmp.ne.s32.totalorder %s116, %s117
      %p128 = scmp.eq.s32.totalorder %s19, 0
      %p129 = por %p127, %p128
      %p130 = scmp.ne.s32.totalorder %s116, %s117
      %p131 = scmp.eq.s32.totalorder %s20, 3
      %p132 = por %p130, %p131
      %p134 = scmp.ne.s32.totalorder %s117, %s133
      %p135 = scmp.eq.s32.totalorder %s20, 0
      %p136 = por %p134, %p135
      %p137 = scmp.le.s32.totalorder 1, %s14
      %p138 = scmp.lt.s32.totalorder %s14, 5
      %p139 = pnand %p137, %p138
      %p140 = pneg %p139
      // Predicated region
      $region9: #{tpu_custom_call.1} parent=5 // pred_check
        _
      $region10: #{tpu_custom_call.1} parent=5 // pred_check_branch
        %142 = sbr.rel (%p139) target = $region12
      $region11: #{tpu_custom_call.1} parent=5 // pred_region
        %s143 = ssub.s32 %s14, 1
        // Predicated region
        $region13: #{tpu_custom_call.1} parent=11 // pred_check
          %p144 = pneg %p61
        $region14: #{tpu_custom_call.1} parent=11 // pred_check_branch
          %146 = sbr.rel (%p144) target = $region16
        $region15: #{tpu_custom_call.1} parent=11 // pred_region
          %s148 = ssub.s32 1024, 1024
          %149 = vsyncadd [#allocation5], %s148
          %s150 = sshll.u32 [#allocation4], 4
          %s151 = int_to_ptr.vmem [resolvable:$true] %s150
          %156 = dma.hbm_to_vmem [thread:$0]  %s1, 1024, %s151, [#allocation5], 128, 128, 8
        $region16: #{tpu_custom_call.1} parent=11 // pred_fallthru
          _
        // Predicated region
        $region17: #{tpu_custom_call.1} parent=11 // pred_check
          %p157 = pneg %p82
        $region18: #{tpu_custom_call.1} parent=11 // pred_check_branch
          %159 = sbr.rel (%p157) target = $region20
        $region19: #{tpu_custom_call.1} parent=11 // pred_region
          %s161 = ssub.s32 1024, 1024
          %162 = vsyncadd [#allocation5], %s161
          %s163 = sshll.u32 [#allocation6], 4
          %s164 = int_to_ptr.vmem [resolvable:$true] %s163
          %169 = dma.hbm_to_vmem [thread:$0]  %s2, 1024, %s164, [#allocation5], 128, 128, 8
        $region20: #{tpu_custom_call.1} parent=11 // pred_fallthru
          _
        // Predicated region
        $region21: #{tpu_custom_call.1} parent=11 // pred_check
          %p170 = pneg %p103
        $region22: #{tpu_custom_call.1} parent=11 // pred_check_branch
          %172 = sbr.rel (%p170) target = $region24
        $region23: #{tpu_custom_call.1} parent=11 // pred_region
          _
        $region24: #{tpu_custom_call.1} parent=11 // pred_fallthru
          _
      $region12: #{tpu_custom_call.1} parent=5 // pred_fallthru
        _
      %p173 = scmp.lt.s32.totalorder %s14, 4
      // Predicated region
      $region25: #{tpu_custom_call.1} parent=5 // pred_check
        %p174 = pneg %p173
      $region26: #{tpu_custom_call.1} parent=5 // pred_check_branch
        %176 = sbr.rel (%p174) target = $region28
      $region27: #{tpu_custom_call.1} parent=5 // pred_region
        // Predicated region
        $region29: #{tpu_custom_call.1} parent=27 // pred_check
          %p177 = pneg %p34
        $region30: #{tpu_custom_call.1} parent=27 // pred_check_branch
          %179 = sbr.rel (%p177) target = $region32
        $region31: #{tpu_custom_call.1} parent=27 // pred_region
          %s180 = sand.u32 %s24, 1
          %s181 = scalar_lea.sflag [#allocation3], %s180
          %s182 = sand.u32 %s24, 1
          %s183 = smul.addr %s182, 64
          %s184 = scalar_lea.vmem [#allocation2], %s183
          %s185 = smul.u32 4, %s14
          %s187 = ssub.s32 1024, 1024
          %188 = vsyncadd %s181, %s187
          %s189 = smul.addr %s185, 2
          %s190 = smul.addr %s189, 128
          %s191 = scalar_lea.hbm %s0, %s190
          %s192 = sshll.u32 %s184, 4
          %s193 = int_to_ptr.vmem [resolvable:$true] %s192
          %198 = dma.hbm_to_vmem [thread:$0]  %s191, 1024, %s193, %s181, 128, 128, 8
        $region32: #{tpu_custom_call.1} parent=27 // pred_fallthru
          _
      $region28: #{tpu_custom_call.1} parent=5 // pred_fallthru
        _
      %p199 = scmp.le.s32.totalorder 1, %s14
      %p200 = scmp.lt.s32.totalorder %s14, 5
      %p201 = pnand %p199, %p200
      %p202 = pneg %p201
      // Predicated region
      $region33: #{tpu_custom_call.1} parent=5 // pred_check
        _
      $region34: #{tpu_custom_call.1} parent=5 // pred_check_branch
        %204 = sbr.rel (%p201) target = $region36
      $region35: #{tpu_custom_call.1} parent=5 // pred_region
        %s205 = ssub.s32 %s14, 1
        %s206 = sand.u32 %s27, 1
        %s207 = scalar_lea.sflag [#allocation3], %s206
        %s208 = sand.u32 %s27, 1
        %s209 = smul.addr %s208, 64
        %s210 = scalar_lea.vmem [#allocation2], %s209
        // Predicated region
        $region37: #{tpu_custom_call.1} parent=35 // pred_check
          %p211 = pneg %p40
        $region38: #{tpu_custom_call.1} parent=35 // pred_check_branch
          %213 = sbr.rel (%p211) target = $region40
        $region39: #{tpu_custom_call.1} parent=35 // pred_region
          %214 = dma.done %s207, 1024
        $region40: #{tpu_custom_call.1} parent=35 // pred_fallthru
          _
        // Predicated region
        $region41: #{tpu_custom_call.1} parent=35 // pred_check
          %p215 = pneg %p61
        $region42: #{tpu_custom_call.1} parent=35 // pred_check_branch
          %217 = sbr.rel (%p215) target = $region44
        $region43: #{tpu_custom_call.1} parent=35 // pred_region
          %218 = dma.done [#allocation5], 1024
        $region44: #{tpu_custom_call.1} parent=35 // pred_fallthru
          _
        // Predicated region
        $region45: #{tpu_custom_call.1} parent=35 // pred_check
          %p219 = pneg %p82
        $region46: #{tpu_custom_call.1} parent=35 // pred_check_branch
          %221 = sbr.rel (%p219) target = $region48
        $region47: #{tpu_custom_call.1} parent=35 // pred_region
          %222 = dma.done [#allocation5], 1024
        $region48: #{tpu_custom_call.1} parent=35 // pred_fallthru
          _
        %s223 = sand.u32 %s27, 1
        %s224 = scalar_lea.sflag [#allocation3], %s223
        %s225 = sand.u32 %s27, 1
        %s226 = smul.addr %s225, 64
        %s227 = scalar_lea.vmem [#allocation2], %s226
        %p228 = pneg %p40
        %p229 = pneg %p37
        %p230 = pneg %p61
        %p231 = pneg %p58
        %p232 = pneg %p82
        %p233 = pneg %p79
        %p234 = pneg %p103
        %p235 = pneg %p100
        %p236 = pneg %p129
        %p237 = pneg %p126
        %s238 = smul.u32 4, %s19
        %p239 = scmp.lt.s32.totalorder %s238, 15
        %s240 = scalar_select %p239, %s238, 15
        %s241 = smul.addr %s240, 8
        %s242 = scalar_lea.vmem %s4, %s241
        %s243 = smul.u32 4, %s19
        %s244 = smul.u32 4, %s19
        %p245 = scmp.lt.s32.totalorder %s244, 15
        %s246 = scalar_select %p245, %s244, 15
        %s247 = smul.addr %s246, 8
        %s248 = scalar_lea.vmem %s4, %s247
        %s249 = smul.u32 4, %s19
        %v250 = vld [vmem:[%s210] sm:$0xff]
        %v251 = vld [vmem:[%s210 + $0x10] sm:$0xff]
        %v252 = vld [vmem:[%s210 + $0x20] sm:$0xff]
        %v253 = vld [vmem:[%s210 + $0x30] sm:$0xff]
        %s254 = scalar_lea.vmem %s210, 8 [#allocation2]
        %v255 = vld [vmem:[%s254] sm:$0xff]
        %v256 = vld [vmem:[%s254 + $0x10] sm:$0xff]
        %v257 = vld [vmem:[%s254 + $0x20] sm:$0xff]
        %v258 = vld [vmem:[%s254 + $0x30] sm:$0xff]
        %vm259 = vcmask 523264
        %v260 = vsel %vm259, %v250, 0.0
        %261 = vadd.xlane.f32.xlu0 %v260
        %v262 = vpop.xlane.xlu0 %261
        %v263 = vsel %vm259, %v251, 0.0
        %264 = vadd.xlane.f32.xlu0 %v263
        %v265 = vpop.xlane.xlu0 %264
        %v266 = vsel %vm259, %v252, 0.0
        %267 = vadd.xlane.f32.xlu0 %v266
        %v268 = vpop.xlane.xlu0 %267
        %v269 = vsel %vm259, %v253, 0.0
        %270 = vadd.xlane.f32.xlu0 %v269
        %v271 = vpop.xlane.xlu0 %270
        %v272 = vsel %vm259, %v255, 0.0
        %273 = vadd.xlane.f32.xlu0 %v272
        %v274 = vpop.xlane.xlu0 %273
        %v275 = vsel %vm259, %v256, 0.0
        %276 = vadd.xlane.f32.xlu0 %v275
        %v277 = vpop.xlane.xlu0 %276
        %v278 = vsel %vm259, %v257, 0.0
        %279 = vadd.xlane.f32.xlu0 %v278
        %v280 = vpop.xlane.xlu0 %279
        %v281 = vsel %vm259, %v258, 0.0
        %282 = vadd.xlane.f32.xlu0 %v281
        %v283 = vpop.xlane.xlu0 %282
        %v284 = vadd.f32 %v262, %v274
        %v285 = vadd.f32 %v265, %v277
        %v286 = vadd.f32 %v268, %v280
        %v287 = vadd.f32 %v271, %v283
        %v288 = vmul.f32 %v250, %v250
        %v289 = vmul.f32 %v251, %v251
        %v290 = vmul.f32 %v252, %v252
        %v291 = vmul.f32 %v253, %v253
        %v292 = vsel %vm259, %v288, 0.0
        %293 = vadd.xlane.f32.xlu0 %v292
        %v294 = vpop.xlane.xlu0 %293
        %v295 = vsel %vm259, %v289, 0.0
        %296 = vadd.xlane.f32.xlu0 %v295
        %v297 = vpop.xlane.xlu0 %296
        %v298 = vsel %vm259, %v290, 0.0
        %299 = vadd.xlane.f32.xlu0 %v298
        %v300 = vpop.xlane.xlu0 %299
        %v301 = vsel %vm259, %v291, 0.0
        %302 = vadd.xlane.f32.xlu0 %v301
        %v303 = vpop.xlane.xlu0 %302
        %v304 = vmul.f32 %v255, %v255
        %v305 = vmul.f32 %v256, %v256
        %v306 = vmul.f32 %v257, %v257
        %v307 = vmul.f32 %v258, %v258
        %v308 = vsel %vm259, %v304, 0.0
        %309 = vadd.xlane.f32.xlu0 %v308
        %v310 = vpop.xlane.xlu0 %309
        %v311 = vsel %vm259, %v305, 0.0
        %312 = vadd.xlane.f32.xlu0 %v311
        %v313 = vpop.xlane.xlu0 %312
        %v314 = vsel %vm259, %v306, 0.0
        %315 = vadd.xlane.f32.xlu0 %v314
        %v316 = vpop.xlane.xlu0 %315
        %v317 = vsel %vm259, %v307, 0.0
        %318 = vadd.xlane.f32.xlu0 %v317
        %v319 = vpop.xlane.xlu0 %318
        %v320 = vadd.f32 %v294, %v310
        %v321 = vadd.f32 %v297, %v313
        %v322 = vadd.f32 %v300, %v316
        %v323 = vadd.f32 %v303, %v319
        %v324 = vmul.f32 %v284, 0.0078125
        %v325 = vmul.f32 %v285, 0.0078125
        %v326 = vmul.f32 %v286, 0.0078125
        %v327 = vmul.f32 %v287, 0.0078125
        %v328 = vmul.f32 %v320, 0.0078125
        %v329 = vmul.f32 %v321, 0.0078125
        %v330 = vmul.f32 %v322, 0.0078125
        %v331 = vmul.f32 %v323, 0.0078125
        %v332 = vmul.f32 %v324, %v324
        %v333 = vmul.f32 %v325, %v325
        %v334 = vmul.f32 %v326, %v326
        %v335 = vmul.f32 %v327, %v327
        %v336 = vsub.f32 %v328, %v332
        %v337 = vsub.f32 %v329, %v333
        %v338 = vsub.f32 %v330, %v334
        %v339 = vsub.f32 %v331, %v335
        %v340 = vmax.f32 %v336, 0.0
        %v341 = vmax.f32 %v337, 0.0
        %v342 = vmax.f32 %v338, 0.0
        %v343 = vmax.f32 %v339, 0.0
        %v344 = vadd.f32 %v340, 1e-05
        %v345 = vadd.f32 %v341, 1e-05
        %v346 = vadd.f32 %v342, 1e-05
        %v347 = vadd.f32 %v343, 1e-05
        %v348 = vrsqrt.pop %v344
        %v349 = vrsqrt.pop %v345
        %v350 = vrsqrt.pop %v346
        %v351 = vrsqrt.pop %v347
        %v352 = vsub.f32 %v250, %v324
        %v353 = vsub.f32 %v251, %v325
        %v354 = vsub.f32 %v252, %v326
        %v355 = vsub.f32 %v253, %v327
        %v356 = vmul.f32 %v352, %v348
        %v357 = vmul.f32 %v353, %v349
        %v358 = vmul.f32 %v354, %v350
        %v359 = vmul.f32 %v355, %v351
        %v360 = vsub.f32 %v255, %v324
        %v361 = vsub.f32 %v256, %v325
        %v362 = vsub.f32 %v257, %v326
        %v363 = vsub.f32 %v258, %v327
        %v364 = vmul.f32 %v360, %v348
        %v365 = vmul.f32 %v361, %v349
        %v366 = vmul.f32 %v362, %v350
        %v367 = vmul.f32 %v363, %v351
        %v368 = vld [vmem:[#allocation4] sm:$0xff]
        %v369 = vld [vmem:[#allocation4 + $0x8] sm:$0xff]
        %v370 = vld [vmem:[#allocation4 + $0x10] sm:$0xff]
        %v371 = vld [vmem:[#allocation4 + $0x18] sm:$0xff]
        %v372 = vld [vmem:[#allocation4 + $0x20] sm:$0xff]
        %v373 = vld [vmem:[#allocation4 + $0x28] sm:$0xff]
        %v374 = vld [vmem:[#allocation4 + $0x30] sm:$0xff]
        %v375 = vld [vmem:[#allocation4 + $0x38] sm:$0xff]
        %v376 = vld [vmem:[#allocation6] sm:$0xff]
        %v377 = vld [vmem:[#allocation6 + $0x8] sm:$0xff]
        %v378 = vld [vmem:[#allocation6 + $0x10] sm:$0xff]
        %v379 = vld [vmem:[#allocation6 + $0x18] sm:$0xff]
        %v380 = vld [vmem:[#allocation6 + $0x20] sm:$0xff]
        %v381 = vld [vmem:[#allocation6 + $0x28] sm:$0xff]
        %v382 = vld [vmem:[#allocation6 + $0x30] sm:$0xff]
        %v383 = vld [vmem:[#allocation6 + $0x38] sm:$0xff]
        %v385 = vsel %vm259, %v364, 0
        %v388 = vsel %vm259, %v365, 0
        %v391 = vsel %vm259, %v366, 0
        %v394 = vsel %vm259, %v367, 0
        %396 = vmatprep.subr.mxu0 0.0
        %397 = vmatpush1.msra.mxu0 0.0
        %398 = vmatprep.subr.mxu0 0.0
        %399 = vmatpush1.msra.mxu0 0.0
        %400 = vmatprep.subr.mxu0 0.0
        %401 = vmatpush1.msra.mxu0 0.0
        %402 = vmatprep.subr.mxu0 0.0
        %403 = vmatpush1.msra.mxu0 0.0
        %404 = vmatprep.subr.mxu0 0.0
        %405 = vmatpush1.msra.mxu0 0.0
        %406 = vmatprep.subr.mxu0 0.0
        %407 = vmatpush1.msra.mxu0 0.0
        %408 = vmatprep.subr.mxu0 0.0
        %409 = vmatpush1.msra.mxu0 0.0
        %410 = vmatprep.subr.mxu0 0.0
        %411 = vmatpush1.msra.mxu0 0.0
        %412 = vmatprep.subr.mxu0 0.0
        %413 = vmatpush1.msra.mxu0 %v383
        %414 = vmatprep.subr.mxu0 0.0
        %415 = vmatpush1.msra.mxu0 %v382
        %416 = vmatprep.subr.mxu0 0.0
        %417 = vmatpush1.msra.mxu0 %v381
        %418 = vmatprep.subr.mxu0 0.0
        %419 = vmatpush1.msra.mxu0 %v380
        %420 = vmatprep.subr.mxu0 0.0
        %421 = vmatpush1.msra.mxu0 %v379
        %422 = vmatprep.subr.mxu0 0.0
        %423 = vmatpush1.msra.mxu0 %v378
        %424 = vmatprep.subr.mxu0 0.0
        %425 = vmatpush1.msra.mxu0 %v377
        %426 = vmatprep.subr.mxu0 0.0
        %427 = vmatpush1.msra.mxu0 %v376
        %428 = vmatprep.subr.mxu0 0.0
        %429 = vmatpush2.msra.mxu0 0.0
        %430 = vmatprep.subr.mxu0 0.0
        %431 = vmatpush2.msra.mxu0 0.0
        %432 = vmatprep.subr.mxu0 0.0
        %433 = vmatpush2.msra.mxu0 0.0
        %434 = vmatprep.subr.mxu0 0.0
        %435 = vmatpush2.msra.mxu0 0.0
        %436 = vmatprep.subr.mxu0 0.0
        %437 = vmatpush2.msra.mxu0 0.0
        %438 = vmatprep.subr.mxu0 0.0
        %439 = vmatpush2.msra.mxu0 0.0
        %440 = vmatprep.subr.mxu0 0.0
        %441 = vmatpush2.msra.mxu0 0.0
        %442 = vmatprep.subr.mxu0 0.0
        %443 = vmatpush2.msra.mxu0 0.0
        %444 = vmatprep.subr.mxu0 0.0
        %445 = vmatpush2.msra.mxu0 0.0
        %446 = vmatprep.subr.mxu0 0.0
        %447 = vmatpush2.msra.mxu0 0.0
        %448 = vmatprep.subr.mxu0 0.0
        %449 = vmatpush2.msra.mxu0 0.0
        %450 = vmatprep.subr.mxu0 0.0
        %451 = vmatpush2.msra.mxu0 0.0
        %452 = vmatprep.subr.mxu0 0.0
        %453 = vmatpush2.msra.mxu0 0.0
        %454 = vmatprep.subr.mxu0 0.0
        %455 = vmatpush2.msra.mxu0 0.0
        %456 = vmatprep.subr.mxu0 0.0
        %457 = vmatpush2.msra.mxu0 0.0
        %458 = vmatprep.subr.mxu0 0.0
        %459 = vmatpush2.msra.mxu0 0.0
        %460 = vmatprep.mubr.f32.mxu0 0.0
        %461 = vmatmul.mubr.f32.gmra.mxu0 %v385
        %v462 = vpop.f32.mrf.mxu0
        %v463 = vadd.f32 0.0, %v462
        %v464 = vpop.f32.mrf.mxu0
        %465 = vmatprep.mubr.f32.mxu0 0.0
        %466 = vmatmul.mubr.f32.gmra.mxu0 %v388
        %v467 = vpop.f32.mrf.mxu0
        %v468 = vadd.f32 0.0, %v467
        %v469 = vpop.f32.mrf.mxu0
        %470 = vmatprep.mubr.f32.mxu0 0.0
        %471 = vmatmul.mubr.f32.gmra.mxu0 %v391
        %v472 = vpop.f32.mrf.mxu0
        %v473 = vadd.f32 0.0, %v472
        %v474 = vpop.f32.mrf.mxu0
        %475 = vmatprep.mubr.f32.mxu0 0.0
        %476 = vmatmul.mubr.f32.gmra.mxu0 %v394
        %v477 = vpop.f32.mrf.mxu0
        %v478 = vadd.f32 0.0, %v477
        %v479 = vpop.f32.mrf.mxu0
        %480 = vdwg.mxu0
        %v482 = vsel %vm259, %v356, 0
        %v485 = vsel %vm259, %v357, 0
        %v488 = vsel %vm259, %v358, 0
        %v491 = vsel %vm259, %v359, 0
        %493 = vmatprep.subr.mxu0 0.0
        %494 = vmatpush1.msra.mxu0 0.0
        %495 = vmatprep.subr.mxu0 0.0
        %496 = vmatpush1.msra.mxu0 0.0
        %497 = vmatprep.subr.mxu0 0.0
        %498 = vmatpush1.msra.mxu0 0.0
        %499 = vmatprep.subr.mxu0 0.0
        %500 = vmatpush1.msra.mxu0 0.0
        %501 = vmatprep.subr.mxu0 0.0
        %502 = vmatpush1.msra.mxu0 0.0
        %503 = vmatprep.subr.mxu0 0.0
        %504 = vmatpush1.msra.mxu0 0.0
        %505 = vmatprep.subr.mxu0 0.0
        %506 = vmatpush1.msra.mxu0 0.0
        %507 = vmatprep.subr.mxu0 0.0
        %508 = vmatpush1.msra.mxu0 0.0
        %509 = vmatprep.subr.mxu0 0.0
        %510 = vmatpush1.msra.mxu0 %v375
        %511 = vmatprep.subr.mxu0 0.0
        %512 = vmatpush1.msra.mxu0 %v374
        %513 = vmatprep.subr.mxu0 0.0
        %514 = vmatpush1.msra.mxu0 %v373
        %515 = vmatprep.subr.mxu0 0.0
        %516 = vmatpush1.msra.mxu0 %v372
        %517 = vmatprep.subr.mxu0 0.0
        %518 = vmatpush1.msra.mxu0 %v371
        %519 = vmatprep.subr.mxu0 0.0
        %520 = vmatpush1.msra.mxu0 %v370
        %521 = vmatprep.subr.mxu0 0.0
        %522 = vmatpush1.msra.mxu0 %v369
        %523 = vmatprep.subr.mxu0 0.0
        %524 = vmatpush1.msra.mxu0 %v368
        %525 = vmatprep.subr.mxu0 0.0
        %526 = vmatpush2.msra.mxu0 0.0
        %527 = vmatprep.subr.mxu0 0.0
        %528 = vmatpush2.msra.mxu0 0.0
        %529 = vmatprep.subr.mxu0 0.0
        %530 = vmatpush2.msra.mxu0 0.0
        %531 = vmatprep.subr.mxu0 0.0
        %532 = vmatpush2.msra.mxu0 0.0
        %533 = vmatprep.subr.mxu0 0.0
        %534 = vmatpush2.msra.mxu0 0.0
        %535 = vmatprep.subr.mxu0 0.0
        %536 = vmatpush2.msra.mxu0 0.0
        %537 = vmatprep.subr.mxu0 0.0
        %538 = vmatpush2.msra.mxu0 0.0
        %539 = vmatprep.subr.mxu0 0.0
        %540 = vmatpush2.msra.mxu0 0.0
        %541 = vmatprep.subr.mxu0 0.0
        %542 = vmatpush2.msra.mxu0 0.0
        %543 = vmatprep.subr.mxu0 0.0
        %544 = vmatpush2.msra.mxu0 0.0
        %545 = vmatprep.subr.mxu0 0.0
        %546 = vmatpush2.msra.mxu0 0.0
        %547 = vmatprep.subr.mxu0 0.0
        %548 = vmatpush2.msra.mxu0 0.0
        %549 = vmatprep.subr.mxu0 0.0
        %550 = vmatpush2.msra.mxu0 0.0
        %551 = vmatprep.subr.mxu0 0.0
        %552 = vmatpush2.msra.mxu0 0.0
        %553 = vmatprep.subr.mxu0 0.0
        %554 = vmatpush2.msra.mxu0 0.0
        %555 = vmatprep.subr.mxu0 0.0
        %556 = vmatpush2.msra.mxu0 0.0
        %557 = vmatprep.mubr.f32.mxu0 0.0
        %558 = vmatmul.mubr.f32.gmra.mxu0 %v482
        %v559 = vpop.f32.mrf.mxu0
        %v560 = vadd.f32 %v463, %v559
        %v561 = vpop.f32.mrf.mxu0
        %562 = vmatprep.mubr.f32.mxu0 0.0
        %563 = vmatmul.mubr.f32.gmra.mxu0 %v485
        %v564 = vpop.f32.mrf.mxu0
        %v565 = vadd.f32 %v468, %v564
        %v566 = vpop.f32.mrf.mxu0
        %567 = vmatprep.mubr.f32.mxu0 0.0
        %568 = vmatmul.mubr.f32.gmra.mxu0 %v488
        %v569 = vpop.f32.mrf.mxu0
        %v570 = vadd.f32 %v473, %v569
        %v571 = vpop.f32.mrf.mxu0
        %572 = vmatprep.mubr.f32.mxu0 0.0
        %573 = vmatmul.mubr.f32.gmra.mxu0 %v491
        %v574 = vpop.f32.mrf.mxu0
        %v575 = vadd.f32 %v478, %v574
        %v576 = vpop.f32.mrf.mxu0
        %577 = vdwg.mxu0
        %v578 = vld [vmem:[%s3] sm:$0x1]
        %v580 = vlaneseq
        %v581 = vshrl.u32 %v580, 7
        %v582 = vsub.s32 0, %v581
        %v583 = vrot.slane %v578, %v582
        %v585 = vadd.f32 %v560, %v583
        %v586 = vadd.f32 %v565, %v583
        %v587 = vadd.f32 %v570, %v583
        %v588 = vadd.f32 %v575, %v583
        %589 = vst.msk [vmem:[%s248] sm:$0xff] %vm259, %v585
        %590 = vst.msk [vmem:[%s248 + $0x8] sm:$0xff] %vm259, %v586
        %591 = vst.msk [vmem:[%s248 + $0x10] sm:$0xff] %vm259, %v587
        %592 = vst.msk [vmem:[%s248 + $0x18] sm:$0xff] %vm259, %v588
        %s593 = smul.u32 4, %s19
        %p594 = scmp.lt.s32.totalorder %s593, 15
        %s595 = scalar_select %p594, %s593, 15
        %s596 = smul.addr %s595, 8
        %s597 = scalar_lea.vmem %s4, %s596
        // Predicated region
        $region49: #{tpu_custom_call.1} parent=35 // pred_check
          %p598 = pneg %p126
        $region50: #{tpu_custom_call.1} parent=35 // pred_check_branch
          %600 = sbr.rel (%p598) target = $region52
        $region51: #{tpu_custom_call.1} parent=35 // pred_region
          %s601 = smul.u32 4, %s19
        $region52: #{tpu_custom_call.1} parent=35 // pred_fallthru
          _
      $region36: #{tpu_custom_call.1} parent=5 // pred_fallthru
        _
      %p602 = scmp.le.s32.totalorder 2, %s14
      // Predicated region
      $region53: #{tpu_custom_call.1} parent=5 // pred_check
        %p603 = pneg %p602
      $region54: #{tpu_custom_call.1} parent=5 // pred_check_branch
        %605 = sbr.rel (%p603) target = $region56
      $region55: #{tpu_custom_call.1} parent=5 // pred_region
        %s606 = ssub.s32 %s14, 2
        // Predicated region
        $region57: #{tpu_custom_call.1} parent=55 // pred_check
          %p607 = pneg %p132
        $region58: #{tpu_custom_call.1} parent=55 // pred_check_branch
          %609 = sbr.rel (%p607) target = $region60
        $region59: #{tpu_custom_call.1} parent=55 // pred_region
          %s610 = smul.u32 4, %s20
          %p611 = scmp.lt.s32.totalorder %s610, 15
          %s612 = scalar_select %p611, %s610, 15
          %s613 = smul.addr %s612, 8
          %s614 = scalar_lea.vmem %s4, %s613
        $region60: #{tpu_custom_call.1} parent=55 // pred_fallthru
          _
      $region56: #{tpu_custom_call.1} parent=5 // pred_fallthru
        _
    $region6: #{tpu_custom_call.1} parent=1 // loop_footer
      %s18 = sadd.s32 1, %s14
    $region7: #{tpu_custom_call.1} parent=1 // loop_footer_branch
      %13 = sbr.rel target = $region3
    $region8: #{tpu_custom_call.1} parent=1 // loop_exit
      _
    %615 = vsyncpa [#allocation3], 1
    %s616 = scalar_lea.sflag [#allocation3], 1
    %617 = vsyncpa %s616, 1
    %618 = vsyncpa [#allocation5], 1

</llo_original>
